<compile_context>
chip_gen: v5e
topology: v5e:2x2
jax: 0.10.0
libtpu: 0.0.40
codegen_flags: <defaults>
</compile_context>

<pallas_src>
import functools

import numpy as np
import jax
import jax.numpy as jnp
from jax.experimental import pallas as pl
from jax.experimental.pallas import tpu as pltpu

# ---- small synthetic BERT config (hidden=32, 2 layers, 4 heads) -------------
HIDDEN = 32
NUM_HEADS = 4
HEAD_DIM = HIDDEN // NUM_HEADS
NUM_LAYERS = 2
INTERMEDIATE = 64
VOCAB = 100
MAX_POS = 16
TYPE_VOCAB = 2
SEQ_NUM_LABELS = 7        # classifier_emotions
CAUSES_NUM_LABELS = 3     # classifier_causes
LN_EPS = 1e-12
PAD_N = 128               # lane-dense output width for the merged classifier slab


# --------------------------- fused Pallas kernel ------------------------------

def _bert_multitask_kernel(
    ids_ref, tids_ref, amask_ref,
    word_emb_ref, pos_emb_ref, type_emb_ref,
    emb_ln_g_ref, emb_ln_b_ref,
    wqkv_ref, bqkv_ref, wo_ref, bo_ref,
    ln1_g_ref, ln1_b_ref, w1_ref, b1_ref, w2_ref, b2_ref,
    ln2_g_ref, ln2_b_ref,
    pool_w_ref, pool_b_ref, clf_w_ref, clf_b_ref,
    hm_k_ref, hm_v_ref, headsum_ref,
    out_ref,
    *, seq, hidden, num_layers, num_heads):
  """Whole BertMultitask forward for ONE sequence (one grid step)."""
  f32 = jnp.float32

  def layernorm(x, g, b):
    mean = jnp.mean(x, axis=-1, keepdims=True)
    var = jnp.mean((x - mean) ** 2, axis=-1, keepdims=True)
    return (x - mean) * jax.lax.rsqrt(var + LN_EPS) * g + b

  def gelu(y):
    # TODO(synk): HF BERT default hidden_act='gelu' is the exact erf form; the
    # tanh approximation is used here (~1e-3 activation difference).
    return 0.5 * y * (1.0 + jnp.tanh(
        0.7978845608028654 * (y + 0.044715 * y * y * y)))

  # ---- embeddings, gathered in-kernel --------------------------------------
  ids = ids_ref[...]                                           # [S, 1] int32
  vocab_iota = jax.lax.broadcasted_iota(jnp.int32, (seq, VOCAB), 1)
  word = jnp.dot((vocab_iota == ids).astype(f32), word_emb_ref[...],
                 preferred_element_type=f32)                   # [S, H]
  pos = pos_emb_ref[0:seq, :]                                  # [S, H] static rows
  # Token-type lookup specialised to TYPE_VOCAB == 2 (a single VPU select).
  typ = jnp.where(tids_ref[...] == 0,
                  type_emb_ref[0:1, :], type_emb_ref[1:2, :])  # [S, H]
  h = layernorm(word + pos + typ, emb_ln_g_ref[...], emb_ln_b_ref[...])

  # ---- additive attention-mask bias: computed + head-tiled once ------------
  bias = (1.0 - amask_ref[...].astype(f32)) * -10000.0         # [1, S]
  bias_all = jnp.concatenate([bias] * num_heads, axis=1)       # [1, nH*S]

  hm_k = hm_k_ref[...]          # [H, nH*S]   keep-own-head mask for K^T tiling
  hm_v = hm_v_ref[...]          # [nH*S, H]   keep-own-head mask for V tiling
  headsum = headsum_ref[...]    # [nH*S, nH*S] per-head lane-sum matrix

  for l in range(num_layers):   # static unroll (L = 2)
    # Fused QKV projection; 1/sqrt(head_dim) is pre-folded into the Q columns.
    qkv = jnp.dot(h, wqkv_ref[l], preferred_element_type=f32) + bqkv_ref[l]
    q = qkv[:, 0 * hidden:1 * hidden]                          # [S, H]
    k = qkv[:, 1 * hidden:2 * hidden]
    v = qkv[:, 2 * hidden:3 * hidden]

    # All heads at once via block-diagonal matmuls (no per-head loop/concat):
    #   scores[q, h*S + k'] = sum_d q[q, h*dh + d] * k[k', h*dh + d]
    k_bd = jnp.concatenate([k.T] * num_heads, axis=1) * hm_k       # [H, nH*S]
    s = jnp.dot(q, k_bd, preferred_element_type=f32) + bias_all    # [S, nH*S]
    # Subtracting the row max over ALL heads is a per-(row, head) constant
    # shift, so every head's softmax is unchanged; one XLU reduce total.
    s = s - jnp.max(s, axis=-1, keepdims=True)
    p = jnp.exp(s)
    denom = jnp.dot(p, headsum, preferred_element_type=f32)        # per-head sums
    p = p * pl.reciprocal(denom, approx=True)
    v_bd = jnp.concatenate([v] * num_heads, axis=0) * hm_v         # [nH*S, H]
    ctx = jnp.dot(p, v_bd, preferred_element_type=f32)             # [S, H] merged

    attn_out = jnp.dot(ctx, wo_ref[l], preferred_element_type=f32) + bo_ref[l]
    h = layernorm(h + attn_out, ln1_g_ref[l], ln1_b_ref[l])

    inter = gelu(jnp.dot(h, w1_ref[l], preferred_element_type=f32) + b1_ref[l])
    ffn = jnp.dot(inter, w2_ref[l], preferred_element_type=f32) + b2_ref[l]
    h = layernorm(h + ffn, ln2_g_ref[l], ln2_b_ref[l])

  # ---- pooler + both classifier heads into one lane-dense output block -----
  pooled = jnp.tanh(jnp.dot(h[0:1, :], pool_w_ref[...],
                            preferred_element_type=f32) + pool_b_ref[...])
  clf_w = clf_w_ref[...]
  clf_b = clf_b_ref[...]
  cause_rows = jnp.dot(h, clf_w, preferred_element_type=f32) + clf_b  # [S, 128]
  emo_row = jnp.dot(pooled, clf_w, preferred_element_type=f32) + clf_b  # [1, 128]
  out_ref[0:seq, :] = cause_rows.astype(out_ref.dtype)
  out_ref[seq:seq + 1, :] = emo_row.astype(out_ref.dtype)


# ----------------------------- parameters ------------------------------------

def init_params(key):
  keys = iter(jax.random.split(key, 12))

  def normal(shape):
    return 0.02 * jax.random.normal(next(keys), shape, dtype=jnp.float32)

  wqkv = normal((NUM_LAYERS, HIDDEN, 3 * HIDDEN))
  bqkv = jnp.zeros((NUM_LAYERS, 1, 3 * HIDDEN), jnp.float32)
  # Fold the attention scale 1/sqrt(head_dim) into the Q projection (first
  # HIDDEN output columns of the fused QKV weight / bias) -- free at init.
  scale = 1.0 / (HEAD_DIM ** 0.5)
  wqkv = wqkv.at[:, :, :HIDDEN].multiply(scale)
  bqkv = bqkv.at[:, :, :HIDDEN].multiply(scale)

  params = {
      "word_emb": normal((VOCAB, HIDDEN)),
      "pos_emb": normal((MAX_POS, HIDDEN)),
      "type_emb": normal((TYPE_VOCAB, HIDDEN)),
      "emb_ln_g": jnp.ones((1, HIDDEN), jnp.float32),
      "emb_ln_b": jnp.zeros((1, HIDDEN), jnp.float32),
      "wqkv": wqkv,
      "bqkv": bqkv,
      "wo": normal((NUM_LAYERS, HIDDEN, HIDDEN)),
      "bo": jnp.zeros((NUM_LAYERS, 1, HIDDEN), jnp.float32),
      "ln1_g": jnp.ones((NUM_LAYERS, 1, HIDDEN), jnp.float32),
      "ln1_b": jnp.zeros((NUM_LAYERS, 1, HIDDEN), jnp.float32),
      "w1": normal((NUM_LAYERS, HIDDEN, INTERMEDIATE)),
      "b1": jnp.zeros((NUM_LAYERS, 1, INTERMEDIATE), jnp.float32),
      "w2": normal((NUM_LAYERS, INTERMEDIATE, HIDDEN)),
      "b2": jnp.zeros((NUM_LAYERS, 1, HIDDEN), jnp.float32),
      "ln2_g": jnp.ones((NUM_LAYERS, 1, HIDDEN), jnp.float32),
      "ln2_b": jnp.zeros((NUM_LAYERS, 1, HIDDEN), jnp.float32),
      "pool_w": normal((HIDDEN, HIDDEN)),
      "pool_b": jnp.zeros((1, HIDDEN), jnp.float32),
  }
  # Merged classifier slab: cause head in cols [0:3], emotion head in cols
  # [3:10], zero-padded to 128 lanes for an unmasked lane-dense store.
  # NOTE: weights are [in, out]; loading a torch checkpoint requires transpose.
  cause_w = normal((HIDDEN, CAUSES_NUM_LABELS))
  emo_w = normal((HIDDEN, SEQ_NUM_LABELS))
  clf_w = jnp.zeros((HIDDEN, PAD_N), jnp.float32)
  clf_w = clf_w.at[:, :CAUSES_NUM_LABELS].set(cause_w)
  clf_w = clf_w.at[:, CAUSES_NUM_LABELS:
                   CAUSES_NUM_LABELS + SEQ_NUM_LABELS].set(emo_w)
  params["clf_w"] = clf_w
  params["clf_b"] = jnp.zeros((1, PAD_N), jnp.float32)
  return params


# ----------------------------- forward pass -----------------------------------

def bert_multitask_forward(params, input_ids, attention_mask, token_type_ids):
  B = input_ids.shape[0]
  S = input_ids.shape[-1]
  # PyTorch forward does .squeeze(1); [B,1,S] -> [B,S,1] / [B,1,S] are pure
  # metadata reshapes (the middle dim is 1).
  ids = input_ids.reshape(B, S, 1).astype(jnp.int32)
  tids = token_type_ids.reshape(B, S, 1).astype(jnp.int32)
  amask = attention_mask.reshape(B, 1, S).astype(jnp.int32)

  # Block-diagonal head-selection constants (static shapes -> baked constants).
  lane_head = np.arange(NUM_HEADS * S) // S          # head id of each score lane
  feat_head = np.arange(HIDDEN) // HEAD_DIM          # head id of each feature
  hm_k = jnp.asarray(feat_head[:, None] == lane_head[None, :], jnp.float32)
  hm_v = jnp.asarray(lane_head[:, None] == feat_head[None, :], jnp.float32)
  headsum = jnp.asarray(lane_head[:, None] == lane_head[None, :], jnp.float32)

  kernel = functools.partial(
      _bert_multitask_kernel,
      seq=S, hidden=HIDDEN, num_layers=NUM_LAYERS, num_heads=NUM_HEADS)

  def batched(*tail):
    n = len(tail)
    return pl.BlockSpec((None,) + tuple(tail), lambda b, _n=n: (b,) + (0,) * _n)

  def resident(*shape):
    n = len(shape)
    return pl.BlockSpec(tuple(shape), lambda b, _n=n: (0,) * _n)

  in_specs = [
      batched(S, 1),                                   # input_ids
      batched(S, 1),                                   # token_type_ids
      batched(1, S),                                   # attention_mask
      resident(VOCAB, HIDDEN),                         # word_emb
      resident(MAX_POS, HIDDEN),                       # pos_emb
      resident(TYPE_VOCAB, HIDDEN),                    # type_emb
      resident(1, HIDDEN), resident(1, HIDDEN),        # emb LN
      resident(NUM_LAYERS, HIDDEN, 3 * HIDDEN),        # wqkv
      resident(NUM_LAYERS, 1, 3 * HIDDEN),             # bqkv
      resident(NUM_LAYERS, HIDDEN, HIDDEN),            # wo
      resident(NUM_LAYERS, 1, HIDDEN),                 # bo
      resident(NUM_LAYERS, 1, HIDDEN),                 # ln1_g
      resident(NUM_LAYERS, 1, HIDDEN),                 # ln1_b
      resident(NUM_LAYERS, HIDDEN, INTERMEDIATE),      # w1
      resident(NUM_LAYERS, 1, INTERMEDIATE),           # b1
      resident(NUM_LAYERS, INTERMEDIATE, HIDDEN),      # w2
      resident(NUM_LAYERS, 1, HIDDEN),                 # b2
      resident(NUM_LAYERS, 1, HIDDEN),                 # ln2_g
      resident(NUM_LAYERS, 1, HIDDEN),                 # ln2_b
      resident(HIDDEN, HIDDEN),                        # pool_w
      resident(1, HIDDEN),                             # pool_b
      resident(HIDDEN, PAD_N),                         # clf_w (merged heads)
      resident(1, PAD_N),                              # clf_b
      resident(HIDDEN, NUM_HEADS * S),                 # hm_k
      resident(NUM_HEADS * S, HIDDEN),                 # hm_v
      resident(NUM_HEADS * S, NUM_HEADS * S),          # headsum
  ]

  out = pl.pallas_call(
      kernel,
      grid=(B,),
      out_shape=jax.ShapeDtypeStruct((B, S + 1, PAD_N), jnp.float32),
      in_specs=in_specs,
      out_specs=pl.BlockSpec((None, S + 1, PAD_N), lambda b: (b, 0, 0)),
      compiler_params=pltpu.CompilerParams(
          dimension_semantics=("parallel",)),
  )(ids, tids, amask,
    params["word_emb"], params["pos_emb"], params["type_emb"],
    params["emb_ln_g"], params["emb_ln_b"],
    params["wqkv"], params["bqkv"], params["wo"], params["bo"],
    params["ln1_g"], params["ln1_b"], params["w1"], params["b1"],
    params["w2"], params["b2"], params["ln2_g"], params["ln2_b"],
    params["pool_w"], params["pool_b"], params["clf_w"], params["clf_b"],
    hm_k, hm_v, headsum)

  logits_causes = out[:, :S, :CAUSES_NUM_LABELS]                      # [B, S, 3]
  logits_emotions = out[:, S, CAUSES_NUM_LABELS:
                        CAUSES_NUM_LABELS + SEQ_NUM_LABELS]           # [B, 7]
  return logits_emotions, logits_causes


# ----------------------------- main -------------------------------------------

if __name__ == "__main__":
  B, S = 2, 8
  key = jax.random.PRNGKey(0)
  kp, ki = jax.random.split(key, 2)
  params = init_params(kp)

  input_ids = jax.random.randint(ki, (B, 1, S), 0, VOCAB, dtype=jnp.int32)
  attention_mask = jnp.ones((B, 1, S), dtype=jnp.int32)
  token_type_ids = jnp.zeros((B, 1, S), dtype=jnp.int32)

  fwd = jax.jit(functools.partial(bert_multitask_forward, params))
  logits_emotions, logits_causes = fwd(input_ids, attention_mask, token_type_ids)
  jax.block_until_ready((logits_emotions, logits_causes))

  assert logits_emotions.shape == (B, SEQ_NUM_LABELS)
  assert logits_causes.shape == (B, S, CAUSES_NUM_LABELS)
  assert bool(jnp.all(jnp.isfinite(logits_emotions)))
  assert bool(jnp.all(jnp.isfinite(logits_causes)))
  print("KERNEL_OK")
</pallas_src>

<mosaic_0001>
module attributes {stable_mosaic.version = 11 : i64} {
  func.func @_bert_multitask_kernel(%arg0: i32, %arg1: memref<1x8x1xi32, #tpu.memory_space<vmem>>, %arg2: memref<1x8x1xi32, #tpu.memory_space<vmem>>, %arg3: memref<1x1x8xi32, #tpu.memory_space<vmem>>, %arg4: memref<100x32xf32, #tpu.memory_space<vmem>>, %arg5: memref<16x32xf32, #tpu.memory_space<vmem>>, %arg6: memref<2x32xf32, #tpu.memory_space<vmem>>, %arg7: memref<1x32xf32, #tpu.memory_space<vmem>>, %arg8: memref<1x32xf32, #tpu.memory_space<vmem>>, %arg9: memref<2x32x96xf32, #tpu.memory_space<vmem>>, %arg10: memref<2x1x96xf32, #tpu.memory_space<vmem>>, %arg11: memref<2x32x32xf32, #tpu.memory_space<vmem>>, %arg12: memref<2x1x32xf32, #tpu.memory_space<vmem>>, %arg13: memref<2x1x32xf32, #tpu.memory_space<vmem>>, %arg14: memref<2x1x32xf32, #tpu.memory_space<vmem>>, %arg15: memref<2x32x64xf32, #tpu.memory_space<vmem>>, %arg16: memref<2x1x64xf32, #tpu.memory_space<vmem>>, %arg17: memref<2x64x32xf32, #tpu.memory_space<vmem>>, %arg18: memref<2x1x32xf32, #tpu.memory_space<vmem>>, %arg19: memref<2x1x32xf32, #tpu.memory_space<vmem>>, %arg20: memref<2x1x32xf32, #tpu.memory_space<vmem>>, %arg21: memref<32x32xf32, #tpu.memory_space<vmem>>, %arg22: memref<1x32xf32, #tpu.memory_space<vmem>>, %arg23: memref<32x128xf32, #tpu.memory_space<vmem>>, %arg24: memref<1x128xf32, #tpu.memory_space<vmem>>, %arg25: memref<32x32xf32, #tpu.memory_space<vmem>>, %arg26: memref<32x32xf32, #tpu.memory_space<vmem>>, %arg27: memref<32x32xf32, #tpu.memory_space<vmem>>, %arg28: memref<1x9x128xf32, #tpu.memory_space<vmem>>) attributes {dimension_semantics = [#tpu.dimension_semantics<parallel>], iteration_bounds = array<i64: 2>, scalar_prefetch = 0 : i64, scratch_operands = 0 : i64, tpu.core_type = #tpu.core_type<tc>, window_params = [{transform_indices = @transform_0, window_bounds = array<i64: 1, 8, 1>}, {transform_indices = @transform_1, window_bounds = array<i64: 1, 8, 1>}, {transform_indices = @transform_2, window_bounds = array<i64: 1, 1, 8>}, {pipeline_mode = #tpu.pipeline_mode<synchronous>, transform_indices = @transform_3, window_bounds = array<i64: 100, 32>}, {pipeline_mode = #tpu.pipeline_mode<synchronous>, transform_indices = @transform_4, window_bounds = array<i64: 16, 32>}, {pipeline_mode = #tpu.pipeline_mode<synchronous>, transform_indices = @transform_5, window_bounds = array<i64: 2, 32>}, {pipeline_mode = #tpu.pipeline_mode<synchronous>, transform_indices = @transform_6, window_bounds = array<i64: 1, 32>}, {pipeline_mode = #tpu.pipeline_mode<synchronous>, transform_indices = @transform_7, window_bounds = array<i64: 1, 32>}, {pipeline_mode = #tpu.pipeline_mode<synchronous>, transform_indices = @transform_8, window_bounds = array<i64: 2, 32, 96>}, {pipeline_mode = #tpu.pipeline_mode<synchronous>, transform_indices = @transform_9, window_bounds = array<i64: 2, 1, 96>}, {pipeline_mode = #tpu.pipeline_mode<synchronous>, transform_indices = @transform_10, window_bounds = array<i64: 2, 32, 32>}, {pipeline_mode = #tpu.pipeline_mode<synchronous>, transform_indices = @transform_11, window_bounds = array<i64: 2, 1, 32>}, {pipeline_mode = #tpu.pipeline_mode<synchronous>, transform_indices = @transform_12, window_bounds = array<i64: 2, 1, 32>}, {pipeline_mode = #tpu.pipeline_mode<synchronous>, transform_indices = @transform_13, window_bounds = array<i64: 2, 1, 32>}, {pipeline_mode = #tpu.pipeline_mode<synchronous>, transform_indices = @transform_14, window_bounds = array<i64: 2, 32, 64>}, {pipeline_mode = #tpu.pipeline_mode<synchronous>, transform_indices = @transform_15, window_bounds = array<i64: 2, 1, 64>}, {pipeline_mode = #tpu.pipeline_mode<synchronous>, transform_indices = @transform_16, window_bounds = array<i64: 2, 64, 32>}, {pipeline_mode = #tpu.pipeline_mode<synchronous>, transform_indices = @transform_17, window_bounds = array<i64: 2, 1, 32>}, {pipeline_mode = #tpu.pipeline_mode<synchronous>, transform_indices = @transform_18, window_bounds = array<i64: 2, 1, 32>}, {pipeline_mode = #tpu.pipeline_mode<synchronous>, transform_indices = @transform_19, window_bounds = array<i64: 2, 1, 32>}, {pipeline_mode = #tpu.pipeline_mode<synchronous>, transform_indices = @transform_20, window_bounds = array<i64: 32, 32>}, {pipeline_mode = #tpu.pipeline_mode<synchronous>, transform_indices = @transform_21, window_bounds = array<i64: 1, 32>}, {pipeline_mode = #tpu.pipeline_mode<synchronous>, transform_indices = @transform_22, window_bounds = array<i64: 32, 128>}, {pipeline_mode = #tpu.pipeline_mode<synchronous>, transform_indices = @transform_23, window_bounds = array<i64: 1, 128>}, {pipeline_mode = #tpu.pipeline_mode<synchronous>, transform_indices = @transform_24, window_bounds = array<i64: 32, 32>}, {pipeline_mode = #tpu.pipeline_mode<synchronous>, transform_indices = @transform_25, window_bounds = array<i64: 32, 32>}, {pipeline_mode = #tpu.pipeline_mode<synchronous>, transform_indices = @transform_26, window_bounds = array<i64: 32, 32>}, {transform_indices = @transform_27, window_bounds = array<i64: 1, 9, 128>}]} {
    %c0 = arith.constant 0 : index
    %c0_0 = arith.constant 0 : index
    %c0_1 = arith.constant 0 : index
    %0 = vector.load %arg1[%c0, %c0_0, %c0_1] : memref<1x8x1xi32, #tpu.memory_space<vmem>>, vector<1x8x1xi32>
    %1 = vector.shape_cast %0 : vector<1x8x1xi32> to vector<8x1xi32>
    %2 = tpu.iota {dimensions = array<i32: 1>} : vector<8x100xi32>
    %3 = vector.broadcast %1 : vector<8x1xi32> to vector<8x100xi32>
    %4 = arith.cmpi eq, %2, %3 : vector<8x100xi32>
    %5 = arith.extui %4 : vector<8x100xi1> to vector<8x100xi32>
    %6 = arith.sitofp %5 : vector<8x100xi32> to vector<8x100xf32>
    %c0_2 = arith.constant 0 : index
    %c0_3 = arith.constant 0 : index
    %7 = vector.load %arg4[%c0_2, %c0_3] : memref<100x32xf32, #tpu.memory_space<vmem>>, vector<100x32xf32>
    %cst = arith.constant dense<0.000000e+00> : vector<8x32xf32>
    %8 = tpu.matmul %6, %7, %cst {dimension_numbers = #tpu.dot_dimension_numbers<[1], [0], [0], [1], [0, 0, 1, 1], [], []>} : vector<8x100xf32>, vector<100x32xf32>, vector<8x32xf32> -> vector<8x32xf32>
    %c0_4 = arith.constant 0 : index
    %c0_5 = arith.constant 0 : index
    %9 = vector.load %arg5[%c0_4, %c0_5] : memref<16x32xf32, #tpu.memory_space<vmem>>, vector<8x32xf32>
    %c0_6 = arith.constant 0 : index
    %c0_7 = arith.constant 0 : index
    %c0_8 = arith.constant 0 : index
    %10 = vector.load %arg2[%c0_6, %c0_7, %c0_8] : memref<1x8x1xi32, #tpu.memory_space<vmem>>, vector<1x8x1xi32>
    %11 = vector.shape_cast %10 : vector<1x8x1xi32> to vector<8x1xi32>
    %c0_i32 = arith.constant 0 : i32
    %12 = vector.broadcast %c0_i32 : i32 to vector<8x1xi32>
    %13 = arith.cmpi eq, %11, %12 : vector<8x1xi32>
    %c0_9 = arith.constant 0 : index
    %c0_10 = arith.constant 0 : index
    %14 = vector.load %arg6[%c0_9, %c0_10] : memref<2x32xf32, #tpu.memory_space<vmem>>, vector<1x32xf32>
    %c1 = arith.constant 1 : index
    %c0_11 = arith.constant 0 : index
    %15 = vector.load %arg6[%c1, %c0_11] : memref<2x32xf32, #tpu.memory_space<vmem>>, vector<1x32xf32>
    %16 = vector.shape_cast %13 : vector<8x1xi1> to vector<8x1xi1>
    %17 = vector.broadcast %16 : vector<8x1xi1> to vector<8x32xi1>
    %18 = vector.shape_cast %14 : vector<1x32xf32> to vector<1x32xf32>
    %19 = vector.broadcast %18 : vector<1x32xf32> to vector<8x32xf32>
    %20 = vector.shape_cast %15 : vector<1x32xf32> to vector<1x32xf32>
    %21 = vector.broadcast %20 : vector<1x32xf32> to vector<8x32xf32>
    %22 = arith.select %17, %19, %21 : vector<8x32xi1>, vector<8x32xf32>
    %23 = arith.addf %8, %9 : vector<8x32xf32>
    %24 = arith.addf %23, %22 : vector<8x32xf32>
    %c0_12 = arith.constant 0 : index
    %c0_13 = arith.constant 0 : index
    %25 = vector.load %arg7[%c0_12, %c0_13] : memref<1x32xf32, #tpu.memory_space<vmem>>, vector<1x32xf32>
    %c0_14 = arith.constant 0 : index
    %c0_15 = arith.constant 0 : index
    %26 = vector.load %arg8[%c0_14, %c0_15] : memref<1x32xf32, #tpu.memory_space<vmem>>, vector<1x32xf32>
    %cst_16 = arith.constant dense<0.000000e+00> : vector<8xf32>
    %27 = vector.multi_reduction <add>, %24, %cst_16 [1] : vector<8x32xf32> to vector<8xf32>
    %28 = vector.shape_cast %27 : vector<8xf32> to vector<8x1xf32>
    %cst_17 = arith.constant 3.200000e+01 : f32
    %29 = vector.broadcast %cst_17 : f32 to vector<8x1xf32>
    %30 = arith.divf %28, %29 : vector<8x1xf32>
    %31 = vector.broadcast %30 : vector<8x1xf32> to vector<8x32xf32>
    %32 = arith.subf %24, %31 : vector<8x32xf32>
    %33 = arith.mulf %32, %32 : vector<8x32xf32>
    %cst_18 = arith.constant dense<0.000000e+00> : vector<8xf32>
    %34 = vector.multi_reduction <add>, %33, %cst_18 [1] : vector<8x32xf32> to vector<8xf32>
    %35 = vector.shape_cast %34 : vector<8xf32> to vector<8x1xf32>
    %cst_19 = arith.constant 3.200000e+01 : f32
    %36 = vector.broadcast %cst_19 : f32 to vector<8x1xf32>
    %37 = arith.divf %35, %36 : vector<8x1xf32>
    %38 = vector.broadcast %30 : vector<8x1xf32> to vector<8x32xf32>
    %39 = arith.subf %24, %38 : vector<8x32xf32>
    %cst_20 = arith.constant 9.99999996E-13 : f32
    %40 = vector.broadcast %cst_20 : f32 to vector<8x1xf32>
    %41 = arith.addf %37, %40 : vector<8x1xf32>
    %42 = math.rsqrt %41 : vector<8x1xf32>
    %43 = vector.broadcast %42 : vector<8x1xf32> to vector<8x32xf32>
    %44 = arith.mulf %39, %43 : vector<8x32xf32>
    %45 = vector.broadcast %25 : vector<1x32xf32> to vector<8x32xf32>
    %46 = arith.mulf %44, %45 : vector<8x32xf32>
    %47 = vector.broadcast %26 : vector<1x32xf32> to vector<8x32xf32>
    %48 = arith.addf %46, %47 : vector<8x32xf32>
    %c0_21 = arith.constant 0 : index
    %c0_22 = arith.constant 0 : index
    %c0_23 = arith.constant 0 : index
    %49 = vector.load %arg3[%c0_21, %c0_22, %c0_23] : memref<1x1x8xi32, #tpu.memory_space<vmem>>, vector<1x1x8xi32>
    %50 = vector.shape_cast %49 : vector<1x1x8xi32> to vector<1x8xi32>
    %51 = arith.sitofp %50 : vector<1x8xi32> to vector<1x8xf32>
    %cst_24 = arith.constant 1.000000e+00 : f32
    %52 = vector.broadcast %cst_24 : f32 to vector<1x8xf32>
    %53 = arith.subf %52, %51 : vector<1x8xf32>
    %cst_25 = arith.constant -1.000000e+04 : f32
    %54 = vector.broadcast %cst_25 : f32 to vector<1x8xf32>
    %55 = arith.mulf %53, %54 : vector<1x8xf32>
    %56 = tpu.concatenate %55, %55, %55, %55 in 1 : vector<1x8xf32>, vector<1x8xf32>, vector<1x8xf32>, vector<1x8xf32> -> vector<1x32xf32>
    %c0_26 = arith.constant 0 : index
    %c0_27 = arith.constant 0 : index
    %57 = vector.load %arg25[%c0_26, %c0_27] : memref<32x32xf32, #tpu.memory_space<vmem>>, vector<32x32xf32>
    %c0_28 = arith.constant 0 : index
    %c0_29 = arith.constant 0 : index
    %58 = vector.load %arg26[%c0_28, %c0_29] : memref<32x32xf32, #tpu.memory_space<vmem>>, vector<32x32xf32>
    %c0_30 = arith.constant 0 : index
    %c0_31 = arith.constant 0 : index
    %59 = vector.load %arg27[%c0_30, %c0_31] : memref<32x32xf32, #tpu.memory_space<vmem>>, vector<32x32xf32>
    %c0_32 = arith.constant 0 : index
    %c0_33 = arith.constant 0 : index
    %c0_34 = arith.constant 0 : index
    %60 = vector.load %arg9[%c0_32, %c0_33, %c0_34] : memref<2x32x96xf32, #tpu.memory_space<vmem>>, vector<1x32x96xf32>
    %61 = vector.shape_cast %60 : vector<1x32x96xf32> to vector<32x96xf32>
    %cst_35 = arith.constant dense<0.000000e+00> : vector<8x96xf32>
    %62 = tpu.matmul %48, %61, %cst_35 {dimension_numbers = #tpu.dot_dimension_numbers<[1], [0], [0], [1], [0, 0, 1, 1], [], []>} : vector<8x32xf32>, vector<32x96xf32>, vector<8x96xf32> -> vector<8x96xf32>
    %c0_36 = arith.constant 0 : index
    %c0_37 = arith.constant 0 : index
    %c0_38 = arith.constant 0 : index
    %63 = vector.load %arg10[%c0_36, %c0_37, %c0_38] : memref<2x1x96xf32, #tpu.memory_space<vmem>>, vector<1x1x96xf32>
    %64 = vector.shape_cast %63 : vector<1x1x96xf32> to vector<1x96xf32>
    %65 = vector.broadcast %64 : vector<1x96xf32> to vector<8x96xf32>
    %66 = arith.addf %62, %65 : vector<8x96xf32>
    %67 = vector.extract_strided_slice %66 {offsets = [0, 0], sizes = [8, 32], strides = [1, 1]} : vector<8x96xf32> to vector<8x32xf32>
    %68 = vector.extract_strided_slice %66 {offsets = [0, 32], sizes = [8, 32], strides = [1, 1]} : vector<8x96xf32> to vector<8x32xf32>
    %69 = vector.extract_strided_slice %66 {offsets = [0, 64], sizes = [8, 32], strides = [1, 1]} : vector<8x96xf32> to vector<8x32xf32>
    %70 = tpu.transpose %68, [1, 0] : vector<8x32xf32> -> vector<32x8xf32>
    %71 = tpu.concatenate %70, %70, %70, %70 in 1 : vector<32x8xf32>, vector<32x8xf32>, vector<32x8xf32>, vector<32x8xf32> -> vector<32x32xf32>
    %72 = arith.mulf %71, %57 : vector<32x32xf32>
    %cst_39 = arith.constant dense<0.000000e+00> : vector<8x32xf32>
    %73 = tpu.matmul %67, %72, %cst_39 {dimension_numbers = #tpu.dot_dimension_numbers<[1], [0], [0], [1], [0, 0, 1, 1], [], []>} : vector<8x32xf32>, vector<32x32xf32>, vector<8x32xf32> -> vector<8x32xf32>
    %74 = vector.broadcast %56 : vector<1x32xf32> to vector<8x32xf32>
    %75 = arith.addf %73, %74 : vector<8x32xf32>
    %cst_40 = arith.constant dense<0xFF800000> : vector<8xf32>
    %76 = vector.multi_reduction <maximumf>, %75, %cst_40 [1] : vector<8x32xf32> to vector<8xf32>
    %77 = vector.shape_cast %76 : vector<8xf32> to vector<8x1xf32>
    %78 = vector.broadcast %77 : vector<8x1xf32> to vector<8x32xf32>
    %79 = arith.subf %75, %78 : vector<8x32xf32>
    %80 = math.exp %79 : vector<8x32xf32>
    %cst_41 = arith.constant dense<0.000000e+00> : vector<8x32xf32>
    %81 = tpu.matmul %80, %59, %cst_41 {dimension_numbers = #tpu.dot_dimension_numbers<[1], [0], [0], [1], [0, 0, 1, 1], [], []>} : vector<8x32xf32>, vector<32x32xf32>, vector<8x32xf32> -> vector<8x32xf32>
    %82 = tpu.reciprocal %81 {approx = true} : vector<8x32xf32> -> vector<8x32xf32>
    %83 = arith.mulf %80, %82 : vector<8x32xf32>
    %84 = tpu.concatenate %69, %69, %69, %69 in 0 : vector<8x32xf32>, vector<8x32xf32>, vector<8x32xf32>, vector<8x32xf32> -> vector<32x32xf32>
    %85 = arith.mulf %84, %58 : vector<32x32xf32>
    %cst_42 = arith.constant dense<0.000000e+00> : vector<8x32xf32>
    %86 = tpu.matmul %83, %85, %cst_42 {dimension_numbers = #tpu.dot_dimension_numbers<[1], [0], [0], [1], [0, 0, 1, 1], [], []>} : vector<8x32xf32>, vector<32x32xf32>, vector<8x32xf32> -> vector<8x32xf32>
    %c0_43 = arith.constant 0 : index
    %c0_44 = arith.constant 0 : index
    %c0_45 = arith.constant 0 : index
    %87 = vector.load %arg11[%c0_43, %c0_44, %c0_45] : memref<2x32x32xf32, #tpu.memory_space<vmem>>, vector<1x32x32xf32>
    %88 = vector.shape_cast %87 : vector<1x32x32xf32> to vector<32x32xf32>
    %cst_46 = arith.constant dense<0.000000e+00> : vector<8x32xf32>
    %89 = tpu.matmul %86, %88, %cst_46 {dimension_numbers = #tpu.dot_dimension_numbers<[1], [0], [0], [1], [0, 0, 1, 1], [], []>} : vector<8x32xf32>, vector<32x32xf32>, vector<8x32xf32> -> vector<8x32xf32>
    %c0_47 = arith.constant 0 : index
    %c0_48 = arith.constant 0 : index
    %c0_49 = arith.constant 0 : index
    %90 = vector.load %arg12[%c0_47, %c0_48, %c0_49] : memref<2x1x32xf32, #tpu.memory_space<vmem>>, vector<1x1x32xf32>
    %91 = vector.shape_cast %90 : vector<1x1x32xf32> to vector<1x32xf32>
    %92 = vector.broadcast %91 : vector<1x32xf32> to vector<8x32xf32>
    %93 = arith.addf %89, %92 : vector<8x32xf32>
    %94 = arith.addf %48, %93 : vector<8x32xf32>
    %c0_50 = arith.constant 0 : index
    %c0_51 = arith.constant 0 : index
    %c0_52 = arith.constant 0 : index
    %95 = vector.load %arg13[%c0_50, %c0_51, %c0_52] : memref<2x1x32xf32, #tpu.memory_space<vmem>>, vector<1x1x32xf32>
    %96 = vector.shape_cast %95 : vector<1x1x32xf32> to vector<1x32xf32>
    %c0_53 = arith.constant 0 : index
    %c0_54 = arith.constant 0 : index
    %c0_55 = arith.constant 0 : index
    %97 = vector.load %arg14[%c0_53, %c0_54, %c0_55] : memref<2x1x32xf32, #tpu.memory_space<vmem>>, vector<1x1x32xf32>
    %98 = vector.shape_cast %97 : vector<1x1x32xf32> to vector<1x32xf32>
    %cst_56 = arith.constant dense<0.000000e+00> : vector<8xf32>
    %99 = vector.multi_reduction <add>, %94, %cst_56 [1] : vector<8x32xf32> to vector<8xf32>
    %100 = vector.shape_cast %99 : vector<8xf32> to vector<8x1xf32>
    %cst_57 = arith.constant 3.200000e+01 : f32
    %101 = vector.broadcast %cst_57 : f32 to vector<8x1xf32>
    %102 = arith.divf %100, %101 : vector<8x1xf32>
    %103 = vector.broadcast %102 : vector<8x1xf32> to vector<8x32xf32>
    %104 = arith.subf %94, %103 : vector<8x32xf32>
    %105 = arith.mulf %104, %104 : vector<8x32xf32>
    %cst_58 = arith.constant dense<0.000000e+00> : vector<8xf32>
    %106 = vector.multi_reduction <add>, %105, %cst_58 [1] : vector<8x32xf32> to vector<8xf32>
    %107 = vector.shape_cast %106 : vector<8xf32> to vector<8x1xf32>
    %cst_59 = arith.constant 3.200000e+01 : f32
    %108 = vector.broadcast %cst_59 : f32 to vector<8x1xf32>
    %109 = arith.divf %107, %108 : vector<8x1xf32>
    %110 = vector.broadcast %102 : vector<8x1xf32> to vector<8x32xf32>
    %111 = arith.subf %94, %110 : vector<8x32xf32>
    %cst_60 = arith.constant 9.99999996E-13 : f32
    %112 = vector.broadcast %cst_60 : f32 to vector<8x1xf32>
    %113 = arith.addf %109, %112 : vector<8x1xf32>
    %114 = math.rsqrt %113 : vector<8x1xf32>
    %115 = vector.broadcast %114 : vector<8x1xf32> to vector<8x32xf32>
    %116 = arith.mulf %111, %115 : vector<8x32xf32>
    %117 = vector.broadcast %96 : vector<1x32xf32> to vector<8x32xf32>
    %118 = arith.mulf %116, %117 : vector<8x32xf32>
    %119 = vector.broadcast %98 : vector<1x32xf32> to vector<8x32xf32>
    %120 = arith.addf %118, %119 : vector<8x32xf32>
    %c0_61 = arith.constant 0 : index
    %c0_62 = arith.constant 0 : index
    %c0_63 = arith.constant 0 : index
    %121 = vector.load %arg15[%c0_61, %c0_62, %c0_63] : memref<2x32x64xf32, #tpu.memory_space<vmem>>, vector<1x32x64xf32>
    %122 = vector.shape_cast %121 : vector<1x32x64xf32> to vector<32x64xf32>
    %cst_64 = arith.constant dense<0.000000e+00> : vector<8x64xf32>
    %123 = tpu.matmul %120, %122, %cst_64 {dimension_numbers = #tpu.dot_dimension_numbers<[1], [0], [0], [1], [0, 0, 1, 1], [], []>} : vector<8x32xf32>, vector<32x64xf32>, vector<8x64xf32> -> vector<8x64xf32>
    %c0_65 = arith.constant 0 : index
    %c0_66 = arith.constant 0 : index
    %c0_67 = arith.constant 0 : index
    %124 = vector.load %arg16[%c0_65, %c0_66, %c0_67] : memref<2x1x64xf32, #tpu.memory_space<vmem>>, vector<1x1x64xf32>
    %125 = vector.shape_cast %124 : vector<1x1x64xf32> to vector<1x64xf32>
    %126 = vector.broadcast %125 : vector<1x64xf32> to vector<8x64xf32>
    %127 = arith.addf %123, %126 : vector<8x64xf32>
    %cst_68 = arith.constant 5.000000e-01 : f32
    %128 = vector.broadcast %cst_68 : f32 to vector<8x64xf32>
    %129 = arith.mulf %128, %127 : vector<8x64xf32>
    %cst_69 = arith.constant 4.471500e-02 : f32
    %130 = vector.broadcast %cst_69 : f32 to vector<8x64xf32>
    %131 = arith.mulf %130, %127 : vector<8x64xf32>
    %132 = arith.mulf %131, %127 : vector<8x64xf32>
    %133 = arith.mulf %132, %127 : vector<8x64xf32>
    %134 = arith.addf %127, %133 : vector<8x64xf32>
    %cst_70 = arith.constant 0.797884583 : f32
    %135 = vector.broadcast %cst_70 : f32 to vector<8x64xf32>
    %136 = arith.mulf %135, %134 : vector<8x64xf32>
    %137 = math.tanh %136 : vector<8x64xf32>
    %cst_71 = arith.constant 1.000000e+00 : f32
    %138 = vector.broadcast %cst_71 : f32 to vector<8x64xf32>
    %139 = arith.addf %138, %137 : vector<8x64xf32>
    %140 = arith.mulf %129, %139 : vector<8x64xf32>
    %c0_72 = arith.constant 0 : index
    %c0_73 = arith.constant 0 : index
    %c0_74 = arith.constant 0 : index
    %141 = vector.load %arg17[%c0_72, %c0_73, %c0_74] : memref<2x64x32xf32, #tpu.memory_space<vmem>>, vector<1x64x32xf32>
    %142 = vector.shape_cast %141 : vector<1x64x32xf32> to vector<64x32xf32>
    %cst_75 = arith.constant dense<0.000000e+00> : vector<8x32xf32>
    %143 = tpu.matmul %140, %142, %cst_75 {dimension_numbers = #tpu.dot_dimension_numbers<[1], [0], [0], [1], [0, 0, 1, 1], [], []>} : vector<8x64xf32>, vector<64x32xf32>, vector<8x32xf32> -> vector<8x32xf32>
    %c0_76 = arith.constant 0 : index
    %c0_77 = arith.constant 0 : index
    %c0_78 = arith.constant 0 : index
    %144 = vector.load %arg18[%c0_76, %c0_77, %c0_78] : memref<2x1x32xf32, #tpu.memory_space<vmem>>, vector<1x1x32xf32>
    %145 = vector.shape_cast %144 : vector<1x1x32xf32> to vector<1x32xf32>
    %146 = vector.broadcast %145 : vector<1x32xf32> to vector<8x32xf32>
    %147 = arith.addf %143, %146 : vector<8x32xf32>
    %148 = arith.addf %120, %147 : vector<8x32xf32>
    %c0_79 = arith.constant 0 : index
    %c0_80 = arith.constant 0 : index
    %c0_81 = arith.constant 0 : index
    %149 = vector.load %arg19[%c0_79, %c0_80, %c0_81] : memref<2x1x32xf32, #tpu.memory_space<vmem>>, vector<1x1x32xf32>
    %150 = vector.shape_cast %149 : vector<1x1x32xf32> to vector<1x32xf32>
    %c0_82 = arith.constant 0 : index
    %c0_83 = arith.constant 0 : index
    %c0_84 = arith.constant 0 : index
    %151 = vector.load %arg20[%c0_82, %c0_83, %c0_84] : memref<2x1x32xf32, #tpu.memory_space<vmem>>, vector<1x1x32xf32>
    %152 = vector.shape_cast %151 : vector<1x1x32xf32> to vector<1x32xf32>
    %cst_85 = arith.constant dense<0.000000e+00> : vector<8xf32>
    %153 = vector.multi_reduction <add>, %148, %cst_85 [1] : vector<8x32xf32> to vector<8xf32>
    %154 = vector.shape_cast %153 : vector<8xf32> to vector<8x1xf32>
    %cst_86 = arith.constant 3.200000e+01 : f32
    %155 = vector.broadcast %cst_86 : f32 to vector<8x1xf32>
    %156 = arith.divf %154, %155 : vector<8x1xf32>
    %157 = vector.broadcast %156 : vector<8x1xf32> to vector<8x32xf32>
    %158 = arith.subf %148, %157 : vector<8x32xf32>
    %159 = arith.mulf %158, %158 : vector<8x32xf32>
    %cst_87 = arith.constant dense<0.000000e+00> : vector<8xf32>
    %160 = vector.multi_reduction <add>, %159, %cst_87 [1] : vector<8x32xf32> to vector<8xf32>
    %161 = vector.shape_cast %160 : vector<8xf32> to vector<8x1xf32>
    %cst_88 = arith.constant 3.200000e+01 : f32
    %162 = vector.broadcast %cst_88 : f32 to vector<8x1xf32>
    %163 = arith.divf %161, %162 : vector<8x1xf32>
    %164 = vector.broadcast %156 : vector<8x1xf32> to vector<8x32xf32>
    %165 = arith.subf %148, %164 : vector<8x32xf32>
    %cst_89 = arith.constant 9.99999996E-13 : f32
    %166 = vector.broadcast %cst_89 : f32 to vector<8x1xf32>
    %167 = arith.addf %163, %166 : vector<8x1xf32>
    %168 = math.rsqrt %167 : vector<8x1xf32>
    %169 = vector.broadcast %168 : vector<8x1xf32> to vector<8x32xf32>
    %170 = arith.mulf %165, %169 : vector<8x32xf32>
    %171 = vector.broadcast %150 : vector<1x32xf32> to vector<8x32xf32>
    %172 = arith.mulf %170, %171 : vector<8x32xf32>
    %173 = vector.broadcast %152 : vector<1x32xf32> to vector<8x32xf32>
    %174 = arith.addf %172, %173 : vector<8x32xf32>
    %c1_90 = arith.constant 1 : index
    %c0_91 = arith.constant 0 : index
    %c0_92 = arith.constant 0 : index
    %175 = vector.load %arg9[%c1_90, %c0_91, %c0_92] : memref<2x32x96xf32, #tpu.memory_space<vmem>>, vector<1x32x96xf32>
    %176 = vector.shape_cast %175 : vector<1x32x96xf32> to vector<32x96xf32>
    %cst_93 = arith.constant dense<0.000000e+00> : vector<8x96xf32>
    %177 = tpu.matmul %174, %176, %cst_93 {dimension_numbers = #tpu.dot_dimension_numbers<[1], [0], [0], [1], [0, 0, 1, 1], [], []>} : vector<8x32xf32>, vector<32x96xf32>, vector<8x96xf32> -> vector<8x96xf32>
    %c1_94 = arith.constant 1 : index
    %c0_95 = arith.constant 0 : index
    %c0_96 = arith.constant 0 : index
    %178 = vector.load %arg10[%c1_94, %c0_95, %c0_96] : memref<2x1x96xf32, #tpu.memory_space<vmem>>, vector<1x1x96xf32>
    %179 = vector.shape_cast %178 : vector<1x1x96xf32> to vector<1x96xf32>
    %180 = vector.broadcast %179 : vector<1x96xf32> to vector<8x96xf32>
    %181 = arith.addf %177, %180 : vector<8x96xf32>
    %182 = vector.extract_strided_slice %181 {offsets = [0, 0], sizes = [8, 32], strides = [1, 1]} : vector<8x96xf32> to vector<8x32xf32>
    %183 = vector.extract_strided_slice %181 {offsets = [0, 32], sizes = [8, 32], strides = [1, 1]} : vector<8x96xf32> to vector<8x32xf32>
    %184 = vector.extract_strided_slice %181 {offsets = [0, 64], sizes = [8, 32], strides = [1, 1]} : vector<8x96xf32> to vector<8x32xf32>
    %185 = tpu.transpose %183, [1, 0] : vector<8x32xf32> -> vector<32x8xf32>
    %186 = tpu.concatenate %185, %185, %185, %185 in 1 : vector<32x8xf32>, vector<32x8xf32>, vector<32x8xf32>, vector<32x8xf32> -> vector<32x32xf32>
    %187 = arith.mulf %186, %57 : vector<32x32xf32>
    %cst_97 = arith.constant dense<0.000000e+00> : vector<8x32xf32>
    %188 = tpu.matmul %182, %187, %cst_97 {dimension_numbers = #tpu.dot_dimension_numbers<[1], [0], [0], [1], [0, 0, 1, 1], [], []>} : vector<8x32xf32>, vector<32x32xf32>, vector<8x32xf32> -> vector<8x32xf32>
    %189 = vector.broadcast %56 : vector<1x32xf32> to vector<8x32xf32>
    %190 = arith.addf %188, %189 : vector<8x32xf32>
    %cst_98 = arith.constant dense<0xFF800000> : vector<8xf32>
    %191 = vector.multi_reduction <maximumf>, %190, %cst_98 [1] : vector<8x32xf32> to vector<8xf32>
    %192 = vector.shape_cast %191 : vector<8xf32> to vector<8x1xf32>
    %193 = vector.broadcast %192 : vector<8x1xf32> to vector<8x32xf32>
    %194 = arith.subf %190, %193 : vector<8x32xf32>
    %195 = math.exp %194 : vector<8x32xf32>
    %cst_99 = arith.constant dense<0.000000e+00> : vector<8x32xf32>
    %196 = tpu.matmul %195, %59, %cst_99 {dimension_numbers = #tpu.dot_dimension_numbers<[1], [0], [0], [1], [0, 0, 1, 1], [], []>} : vector<8x32xf32>, vector<32x32xf32>, vector<8x32xf32> -> vector<8x32xf32>
    %197 = tpu.reciprocal %196 {approx = true} : vector<8x32xf32> -> vector<8x32xf32>
    %198 = arith.mulf %195, %197 : vector<8x32xf32>
    %199 = tpu.concatenate %184, %184, %184, %184 in 0 : vector<8x32xf32>, vector<8x32xf32>, vector<8x32xf32>, vector<8x32xf32> -> vector<32x32xf32>
    %200 = arith.mulf %199, %58 : vector<32x32xf32>
    %cst_100 = arith.constant dense<0.000000e+00> : vector<8x32xf32>
    %201 = tpu.matmul %198, %200, %cst_100 {dimension_numbers = #tpu.dot_dimension_numbers<[1], [0], [0], [1], [0, 0, 1, 1], [], []>} : vector<8x32xf32>, vector<32x32xf32>, vector<8x32xf32> -> vector<8x32xf32>
    %c1_101 = arith.constant 1 : index
    %c0_102 = arith.constant 0 : index
    %c0_103 = arith.constant 0 : index
    %202 = vector.load %arg11[%c1_101, %c0_102, %c0_103] : memref<2x32x32xf32, #tpu.memory_space<vmem>>, vector<1x32x32xf32>
    %203 = vector.shape_cast %202 : vector<1x32x32xf32> to vector<32x32xf32>
    %cst_104 = arith.constant dense<0.000000e+00> : vector<8x32xf32>
    %204 = tpu.matmul %201, %203, %cst_104 {dimension_numbers = #tpu.dot_dimension_numbers<[1], [0], [0], [1], [0, 0, 1, 1], [], []>} : vector<8x32xf32>, vector<32x32xf32>, vector<8x32xf32> -> vector<8x32xf32>
    %c1_105 = arith.constant 1 : index
    %c0_106 = arith.constant 0 : index
    %c0_107 = arith.constant 0 : index
    %205 = vector.load %arg12[%c1_105, %c0_106, %c0_107] : memref<2x1x32xf32, #tpu.memory_space<vmem>>, vector<1x1x32xf32>
    %206 = vector.shape_cast %205 : vector<1x1x32xf32> to vector<1x32xf32>
    %207 = vector.broadcast %206 : vector<1x32xf32> to vector<8x32xf32>
    %208 = arith.addf %204, %207 : vector<8x32xf32>
    %209 = arith.addf %174, %208 : vector<8x32xf32>
    %c1_108 = arith.constant 1 : index
    %c0_109 = arith.constant 0 : index
    %c0_110 = arith.constant 0 : index
    %210 = vector.load %arg13[%c1_108, %c0_109, %c0_110] : memref<2x1x32xf32, #tpu.memory_space<vmem>>, vector<1x1x32xf32>
    %211 = vector.shape_cast %210 : vector<1x1x32xf32> to vector<1x32xf32>
    %c1_111 = arith.constant 1 : index
    %c0_112 = arith.constant 0 : index
    %c0_113 = arith.constant 0 : index
    %212 = vector.load %arg14[%c1_111, %c0_112, %c0_113] : memref<2x1x32xf32, #tpu.memory_space<vmem>>, vector<1x1x32xf32>
    %213 = vector.shape_cast %212 : vector<1x1x32xf32> to vector<1x32xf32>
    %cst_114 = arith.constant dense<0.000000e+00> : vector<8xf32>
    %214 = vector.multi_reduction <add>, %209, %cst_114 [1] : vector<8x32xf32> to vector<8xf32>
    %215 = vector.shape_cast %214 : vector<8xf32> to vector<8x1xf32>
    %cst_115 = arith.constant 3.200000e+01 : f32
    %216 = vector.broadcast %cst_115 : f32 to vector<8x1xf32>
    %217 = arith.divf %215, %216 : vector<8x1xf32>
    %218 = vector.broadcast %217 : vector<8x1xf32> to vector<8x32xf32>
    %219 = arith.subf %209, %218 : vector<8x32xf32>
    %220 = arith.mulf %219, %219 : vector<8x32xf32>
    %cst_116 = arith.constant dense<0.000000e+00> : vector<8xf32>
    %221 = vector.multi_reduction <add>, %220, %cst_116 [1] : vector<8x32xf32> to vector<8xf32>
    %222 = vector.shape_cast %221 : vector<8xf32> to vector<8x1xf32>
    %cst_117 = arith.constant 3.200000e+01 : f32
    %223 = vector.broadcast %cst_117 : f32 to vector<8x1xf32>
    %224 = arith.divf %222, %223 : vector<8x1xf32>
    %225 = vector.broadcast %217 : vector<8x1xf32> to vector<8x32xf32>
    %226 = arith.subf %209, %225 : vector<8x32xf32>
    %cst_118 = arith.constant 9.99999996E-13 : f32
    %227 = vector.broadcast %cst_118 : f32 to vector<8x1xf32>
    %228 = arith.addf %224, %227 : vector<8x1xf32>
    %229 = math.rsqrt %228 : vector<8x1xf32>
    %230 = vector.broadcast %229 : vector<8x1xf32> to vector<8x32xf32>
    %231 = arith.mulf %226, %230 : vector<8x32xf32>
    %232 = vector.broadcast %211 : vector<1x32xf32> to vector<8x32xf32>
    %233 = arith.mulf %231, %232 : vector<8x32xf32>
    %234 = vector.broadcast %213 : vector<1x32xf32> to vector<8x32xf32>
    %235 = arith.addf %233, %234 : vector<8x32xf32>
    %c1_119 = arith.constant 1 : index
    %c0_120 = arith.constant 0 : index
    %c0_121 = arith.constant 0 : index
    %236 = vector.load %arg15[%c1_119, %c0_120, %c0_121] : memref<2x32x64xf32, #tpu.memory_space<vmem>>, vector<1x32x64xf32>
    %237 = vector.shape_cast %236 : vector<1x32x64xf32> to vector<32x64xf32>
    %cst_122 = arith.constant dense<0.000000e+00> : vector<8x64xf32>
    %238 = tpu.matmul %235, %237, %cst_122 {dimension_numbers = #tpu.dot_dimension_numbers<[1], [0], [0], [1], [0, 0, 1, 1], [], []>} : vector<8x32xf32>, vector<32x64xf32>, vector<8x64xf32> -> vector<8x64xf32>
    %c1_123 = arith.constant 1 : index
    %c0_124 = arith.constant 0 : index
    %c0_125 = arith.constant 0 : index
    %239 = vector.load %arg16[%c1_123, %c0_124, %c0_125] : memref<2x1x64xf32, #tpu.memory_space<vmem>>, vector<1x1x64xf32>
    %240 = vector.shape_cast %239 : vector<1x1x64xf32> to vector<1x64xf32>
    %241 = vector.broadcast %240 : vector<1x64xf32> to vector<8x64xf32>
    %242 = arith.addf %238, %241 : vector<8x64xf32>
    %cst_126 = arith.constant 5.000000e-01 : f32
    %243 = vector.broadcast %cst_126 : f32 to vector<8x64xf32>
    %244 = arith.mulf %243, %242 : vector<8x64xf32>
    %cst_127 = arith.constant 4.471500e-02 : f32
    %245 = vector.broadcast %cst_127 : f32 to vector<8x64xf32>
    %246 = arith.mulf %245, %242 : vector<8x64xf32>
    %247 = arith.mulf %246, %242 : vector<8x64xf32>
    %248 = arith.mulf %247, %242 : vector<8x64xf32>
    %249 = arith.addf %242, %248 : vector<8x64xf32>
    %cst_128 = arith.constant 0.797884583 : f32
    %250 = vector.broadcast %cst_128 : f32 to vector<8x64xf32>
    %251 = arith.mulf %250, %249 : vector<8x64xf32>
    %252 = math.tanh %251 : vector<8x64xf32>
    %cst_129 = arith.constant 1.000000e+00 : f32
    %253 = vector.broadcast %cst_129 : f32 to vector<8x64xf32>
    %254 = arith.addf %253, %252 : vector<8x64xf32>
    %255 = arith.mulf %244, %254 : vector<8x64xf32>
    %c1_130 = arith.constant 1 : index
    %c0_131 = arith.constant 0 : index
    %c0_132 = arith.constant 0 : index
    %256 = vector.load %arg17[%c1_130, %c0_131, %c0_132] : memref<2x64x32xf32, #tpu.memory_space<vmem>>, vector<1x64x32xf32>
    %257 = vector.shape_cast %256 : vector<1x64x32xf32> to vector<64x32xf32>
    %cst_133 = arith.constant dense<0.000000e+00> : vector<8x32xf32>
    %258 = tpu.matmul %255, %257, %cst_133 {dimension_numbers = #tpu.dot_dimension_numbers<[1], [0], [0], [1], [0, 0, 1, 1], [], []>} : vector<8x64xf32>, vector<64x32xf32>, vector<8x32xf32> -> vector<8x32xf32>
    %c1_134 = arith.constant 1 : index
    %c0_135 = arith.constant 0 : index
    %c0_136 = arith.constant 0 : index
    %259 = vector.load %arg18[%c1_134, %c0_135, %c0_136] : memref<2x1x32xf32, #tpu.memory_space<vmem>>, vector<1x1x32xf32>
    %260 = vector.shape_cast %259 : vector<1x1x32xf32> to vector<1x32xf32>
    %261 = vector.broadcast %260 : vector<1x32xf32> to vector<8x32xf32>
    %262 = arith.addf %258, %261 : vector<8x32xf32>
    %263 = arith.addf %235, %262 : vector<8x32xf32>
    %c1_137 = arith.constant 1 : index
    %c0_138 = arith.constant 0 : index
    %c0_139 = arith.constant 0 : index
    %264 = vector.load %arg19[%c1_137, %c0_138, %c0_139] : memref<2x1x32xf32, #tpu.memory_space<vmem>>, vector<1x1x32xf32>
    %265 = vector.shape_cast %264 : vector<1x1x32xf32> to vector<1x32xf32>
    %c1_140 = arith.constant 1 : index
    %c0_141 = arith.constant 0 : index
    %c0_142 = arith.constant 0 : index
    %266 = vector.load %arg20[%c1_140, %c0_141, %c0_142] : memref<2x1x32xf32, #tpu.memory_space<vmem>>, vector<1x1x32xf32>
    %267 = vector.shape_cast %266 : vector<1x1x32xf32> to vector<1x32xf32>
    %cst_143 = arith.constant dense<0.000000e+00> : vector<8xf32>
    %268 = vector.multi_reduction <add>, %263, %cst_143 [1] : vector<8x32xf32> to vector<8xf32>
    %269 = vector.shape_cast %268 : vector<8xf32> to vector<8x1xf32>
    %cst_144 = arith.constant 3.200000e+01 : f32
    %270 = vector.broadcast %cst_144 : f32 to vector<8x1xf32>
    %271 = arith.divf %269, %270 : vector<8x1xf32>
    %272 = vector.broadcast %271 : vector<8x1xf32> to vector<8x32xf32>
    %273 = arith.subf %263, %272 : vector<8x32xf32>
    %274 = arith.mulf %273, %273 : vector<8x32xf32>
    %cst_145 = arith.constant dense<0.000000e+00> : vector<8xf32>
    %275 = vector.multi_reduction <add>, %274, %cst_145 [1] : vector<8x32xf32> to vector<8xf32>
    %276 = vector.shape_cast %275 : vector<8xf32> to vector<8x1xf32>
    %cst_146 = arith.constant 3.200000e+01 : f32
    %277 = vector.broadcast %cst_146 : f32 to vector<8x1xf32>
    %278 = arith.divf %276, %277 : vector<8x1xf32>
    %279 = vector.broadcast %271 : vector<8x1xf32> to vector<8x32xf32>
    %280 = arith.subf %263, %279 : vector<8x32xf32>
    %cst_147 = arith.constant 9.99999996E-13 : f32
    %281 = vector.broadcast %cst_147 : f32 to vector<8x1xf32>
    %282 = arith.addf %278, %281 : vector<8x1xf32>
    %283 = math.rsqrt %282 : vector<8x1xf32>
    %284 = vector.broadcast %283 : vector<8x1xf32> to vector<8x32xf32>
    %285 = arith.mulf %280, %284 : vector<8x32xf32>
    %286 = vector.broadcast %265 : vector<1x32xf32> to vector<8x32xf32>
    %287 = arith.mulf %285, %286 : vector<8x32xf32>
    %288 = vector.broadcast %267 : vector<1x32xf32> to vector<8x32xf32>
    %289 = arith.addf %287, %288 : vector<8x32xf32>
    %290 = vector.extract_strided_slice %289 {offsets = [0, 0], sizes = [1, 32], strides = [1, 1]} : vector<8x32xf32> to vector<1x32xf32>
    %c0_148 = arith.constant 0 : index
    %c0_149 = arith.constant 0 : index
    %291 = vector.load %arg21[%c0_148, %c0_149] : memref<32x32xf32, #tpu.memory_space<vmem>>, vector<32x32xf32>
    %cst_150 = arith.constant dense<0.000000e+00> : vector<1x32xf32>
    %292 = tpu.matmul %290, %291, %cst_150 {dimension_numbers = #tpu.dot_dimension_numbers<[1], [0], [0], [1], [0, 0, 1, 1], [], []>} : vector<1x32xf32>, vector<32x32xf32>, vector<1x32xf32> -> vector<1x32xf32>
    %c0_151 = arith.constant 0 : index
    %c0_152 = arith.constant 0 : index
    %293 = vector.load %arg22[%c0_151, %c0_152] : memref<1x32xf32, #tpu.memory_space<vmem>>, vector<1x32xf32>
    %294 = arith.addf %292, %293 : vector<1x32xf32>
    %295 = math.tanh %294 : vector<1x32xf32>
    %c0_153 = arith.constant 0 : index
    %c0_154 = arith.constant 0 : index
    %296 = vector.load %arg23[%c0_153, %c0_154] : memref<32x128xf32, #tpu.memory_space<vmem>>, vector<32x128xf32>
    %c0_155 = arith.constant 0 : index
    %c0_156 = arith.constant 0 : index
    %297 = vector.load %arg24[%c0_155, %c0_156] : memref<1x128xf32, #tpu.memory_space<vmem>>, vector<1x128xf32>
    %cst_157 = arith.constant dense<0.000000e+00> : vector<8x128xf32>
    %298 = tpu.matmul %289, %296, %cst_157 {dimension_numbers = #tpu.dot_dimension_numbers<[1], [0], [0], [1], [0, 0, 1, 1], [], []>} : vector<8x32xf32>, vector<32x128xf32>, vector<8x128xf32> -> vector<8x128xf32>
    %299 = vector.broadcast %297 : vector<1x128xf32> to vector<8x128xf32>
    %300 = arith.addf %298, %299 : vector<8x128xf32>
    %cst_158 = arith.constant dense<0.000000e+00> : vector<1x128xf32>
    %301 = tpu.matmul %295, %296, %cst_158 {dimension_numbers = #tpu.dot_dimension_numbers<[1], [0], [0], [1], [0, 0, 1, 1], [], []>} : vector<1x32xf32>, vector<32x128xf32>, vector<1x128xf32> -> vector<1x128xf32>
    %302 = arith.addf %301, %297 : vector<1x128xf32>
    %c0_159 = arith.constant 0 : index
    %c0_160 = arith.constant 0 : index
    %c0_161 = arith.constant 0 : index
    %303 = vector.load %arg28[%c0_159, %c0_160, %c0_161] : memref<1x9x128xf32, #tpu.memory_space<vmem>>, vector<1x8x128xf32>
    %304 = vector.shape_cast %303 : vector<1x8x128xf32> to vector<8x128xf32>
    %305 = vector.shape_cast %300 : vector<8x128xf32> to vector<1x8x128xf32>
    tpu.vector_store %arg28[%c0_159, %c0_160, %c0_161], %305 {strides = array<i32>} : memref<1x9x128xf32, #tpu.memory_space<vmem>>, vector<1x8x128xf32>,
    %c0_162 = arith.constant 0 : index
    %c8 = arith.constant 8 : index
    %c0_163 = arith.constant 0 : index
    %306 = vector.load %arg28[%c0_162, %c8, %c0_163] : memref<1x9x128xf32, #tpu.memory_space<vmem>>, vector<1x1x128xf32>
    %307 = vector.shape_cast %306 : vector<1x1x128xf32> to vector<1x128xf32>
    %308 = vector.shape_cast %302 : vector<1x128xf32> to vector<1x1x128xf32>
    tpu.vector_store %arg28[%c0_162, %c8, %c0_163], %308 {strides = array<i32>} : memref<1x9x128xf32, #tpu.memory_space<vmem>>, vector<1x1x128xf32>,
    return
  }
  func.func @transform_0(%arg0: i32) -> (i32, i32, i32) {
    %c0_i32 = arith.constant 0 : i32
    %c0_i32_0 = arith.constant 0 : i32
    %c0_i32_1 = arith.constant 0 : i32
    return %arg0, %c0_i32, %c0_i32_0 : i32, i32, i32
  }
  func.func @transform_1(%arg0: i32) -> (i32, i32, i32) {
    %c0_i32 = arith.constant 0 : i32
    %c0_i32_0 = arith.constant 0 : i32
    %c0_i32_1 = arith.constant 0 : i32
    return %arg0, %c0_i32, %c0_i32_0 : i32, i32, i32
  }
  func.func @transform_2(%arg0: i32) -> (i32, i32, i32) {
    %c0_i32 = arith.constant 0 : i32
    %c0_i32_0 = arith.constant 0 : i32
    %c0_i32_1 = arith.constant 0 : i32
    return %arg0, %c0_i32, %c0_i32_0 : i32, i32, i32
  }
  func.func @transform_3(%arg0: i32) -> (i32, i32) {
    %c0_i32 = arith.constant 0 : i32
    %c0_i32_0 = arith.constant 0 : i32
    %c0_i32_1 = arith.constant 0 : i32
    return %c0_i32, %c0_i32_0 : i32, i32
  }
  func.func @transform_4(%arg0: i32) -> (i32, i32) {
    %c0_i32 = arith.constant 0 : i32
    %c0_i32_0 = arith.constant 0 : i32
    %c0_i32_1 = arith.constant 0 : i32
    return %c0_i32, %c0_i32_0 : i32, i32
  }
  func.func @transform_5(%arg0: i32) -> (i32, i32) {
    %c0_i32 = arith.constant 0 : i32
    %c0_i32_0 = arith.constant 0 : i32
    %c0_i32_1 = arith.constant 0 : i32
    return %c0_i32, %c0_i32_0 : i32, i32
  }
  func.func @transform_6(%arg0: i32) -> (i32, i32) {
    %c0_i32 = arith.constant 0 : i32
    %c0_i32_0 = arith.constant 0 : i32
    %c0_i32_1 = arith.constant 0 : i32
    return %c0_i32, %c0_i32_0 : i32, i32
  }
  func.func @transform_7(%arg0: i32) -> (i32, i32) {
    %c0_i32 = arith.constant 0 : i32
    %c0_i32_0 = arith.constant 0 : i32
    %c0_i32_1 = arith.constant 0 : i32
    return %c0_i32, %c0_i32_0 : i32, i32
  }
  func.func @transform_8(%arg0: i32) -> (i32, i32, i32) {
    %c0_i32 = arith.constant 0 : i32
    %c0_i32_0 = arith.constant 0 : i32
    %c0_i32_1 = arith.constant 0 : i32
    %c0_i32_2 = arith.constant 0 : i32
    return %c0_i32, %c0_i32_0, %c0_i32_1 : i32, i32, i32
  }
  func.func @transform_9(%arg0: i32) -> (i32, i32, i32) {
    %c0_i32 = arith.constant 0 : i32
    %c0_i32_0 = arith.constant 0 : i32
    %c0_i32_1 = arith.constant 0 : i32
    %c0_i32_2 = arith.constant 0 : i32
    return %c0_i32, %c0_i32_0, %c0_i32_1 : i32, i32, i32
  }
  func.func @transform_10(%arg0: i32) -> (i32, i32, i32) {
    %c0_i32 = arith.constant 0 : i32
    %c0_i32_0 = arith.constant 0 : i32
    %c0_i32_1 = arith.constant 0 : i32
    %c0_i32_2 = arith.constant 0 : i32
    return %c0_i32, %c0_i32_0, %c0_i32_1 : i32, i32, i32
  }
  func.func @transform_11(%arg0: i32) -> (i32, i32, i32) {
    %c0_i32 = arith.constant 0 : i32
    %c0_i32_0 = arith.constant 0 : i32
    %c0_i32_1 = arith.constant 0 : i32
    %c0_i32_2 = arith.constant 0 : i32
    return %c0_i32, %c0_i32_0, %c0_i32_1 : i32, i32, i32
  }
  func.func @transform_12(%arg0: i32) -> (i32, i32, i32) {
    %c0_i32 = arith.constant 0 : i32
    %c0_i32_0 = arith.constant 0 : i32
    %c0_i32_1 = arith.constant 0 : i32
    %c0_i32_2 = arith.constant 0 : i32
    return %c0_i32, %c0_i32_0, %c0_i32_1 : i32, i32, i32
  }
  func.func @transform_13(%arg0: i32) -> (i32, i32, i32) {
    %c0_i32 = arith.constant 0 : i32
    %c0_i32_0 = arith.constant 0 : i32
    %c0_i32_1 = arith.constant 0 : i32
    %c0_i32_2 = arith.constant 0 : i32
    return %c0_i32, %c0_i32_0, %c0_i32_1 : i32, i32, i32
  }
  func.func @transform_14(%arg0: i32) -> (i32, i32, i32) {
    %c0_i32 = arith.constant 0 : i32
    %c0_i32_0 = arith.constant 0 : i32
    %c0_i32_1 = arith.constant 0 : i32
    %c0_i32_2 = arith.constant 0 : i32
    return %c0_i32, %c0_i32_0, %c0_i32_1 : i32, i32, i32
  }
  func.func @transform_15(%arg0: i32) -> (i32, i32, i32) {
    %c0_i32 = arith.constant 0 : i32
    %c0_i32_0 = arith.constant 0 : i32
    %c0_i32_1 = arith.constant 0 : i32
    %c0_i32_2 = arith.constant 0 : i32
    return %c0_i32, %c0_i32_0, %c0_i32_1 : i32, i32, i32
  }
  func.func @transform_16(%arg0: i32) -> (i32, i32, i32) {
    %c0_i32 = arith.constant 0 : i32
    %c0_i32_0 = arith.constant 0 : i32
    %c0_i32_1 = arith.constant 0 : i32
    %c0_i32_2 = arith.constant 0 : i32
    return %c0_i32, %c0_i32_0, %c0_i32_1 : i32, i32, i32
  }
  func.func @transform_17(%arg0: i32) -> (i32, i32, i32) {
    %c0_i32 = arith.constant 0 : i32
    %c0_i32_0 = arith.constant 0 : i32
    %c0_i32_1 = arith.constant 0 : i32
    %c0_i32_2 = arith.constant 0 : i32
    return %c0_i32, %c0_i32_0, %c0_i32_1 : i32, i32, i32
  }
  func.func @transform_18(%arg0: i32) -> (i32, i32, i32) {
    %c0_i32 = arith.constant 0 : i32
    %c0_i32_0 = arith.constant 0 : i32
    %c0_i32_1 = arith.constant 0 : i32
    %c0_i32_2 = arith.constant 0 : i32
    return %c0_i32, %c0_i32_0, %c0_i32_1 : i32, i32, i32
  }
  func.func @transform_19(%arg0: i32) -> (i32, i32, i32) {
    %c0_i32 = arith.constant 0 : i32
    %c0_i32_0 = arith.constant 0 : i32
    %c0_i32_1 = arith.constant 0 : i32
    %c0_i32_2 = arith.constant 0 : i32
    return %c0_i32, %c0_i32_0, %c0_i32_1 : i32, i32, i32
  }
  func.func @transform_20(%arg0: i32) -> (i32, i32) {
    %c0_i32 = arith.constant 0 : i32
    %c0_i32_0 = arith.constant 0 : i32
    %c0_i32_1 = arith.constant 0 : i32
    return %c0_i32, %c0_i32_0 : i32, i32
  }
  func.func @transform_21(%arg0: i32) -> (i32, i32) {
    %c0_i32 = arith.constant 0 : i32
    %c0_i32_0 = arith.constant 0 : i32
    %c0_i32_1 = arith.constant 0 : i32
    return %c0_i32, %c0_i32_0 : i32, i32
  }
  func.func @transform_22(%arg0: i32) -> (i32, i32) {
    %c0_i32 = arith.constant 0 : i32
    %c0_i32_0 = arith.constant 0 : i32
    %c0_i32_1 = arith.constant 0 : i32
    return %c0_i32, %c0_i32_0 : i32, i32
  }
  func.func @transform_23(%arg0: i32) -> (i32, i32) {
    %c0_i32 = arith.constant 0 : i32
    %c0_i32_0 = arith.constant 0 : i32
    %c0_i32_1 = arith.constant 0 : i32
    return %c0_i32, %c0_i32_0 : i32, i32
  }
  func.func @transform_24(%arg0: i32) -> (i32, i32) {
    %c0_i32 = arith.constant 0 : i32
    %c0_i32_0 = arith.constant 0 : i32
    %c0_i32_1 = arith.constant 0 : i32
    return %c0_i32, %c0_i32_0 : i32, i32
  }
  func.func @transform_25(%arg0: i32) -> (i32, i32) {
    %c0_i32 = arith.constant 0 : i32
    %c0_i32_0 = arith.constant 0 : i32
    %c0_i32_1 = arith.constant 0 : i32
    return %c0_i32, %c0_i32_0 : i32, i32
  }
  func.func @transform_26(%arg0: i32) -> (i32, i32) {
    %c0_i32 = arith.constant 0 : i32
    %c0_i32_0 = arith.constant 0 : i32
    %c0_i32_1 = arith.constant 0 : i32
    return %c0_i32, %c0_i32_0 : i32, i32
  }
  func.func @transform_27(%arg0: i32) -> (i32, i32, i32) {
    %c0_i32 = arith.constant 0 : i32
    %c0_i32_0 = arith.constant 0 : i32
    %c0_i32_1 = arith.constant 0 : i32
    return %arg0, %c0_i32, %c0_i32_0 : i32, i32, i32
  }
}

</mosaic_0001>

<llo_original>
// kernel: bert_multitask_forward.1
$region0: #{bert_multitask_forward.1}
  #allocation0 [shape = 'u32[]', space=smem, size = 0x4, offset = 0x4, fixed_abs, tag = 'smem constant byte address 0x4 - core index']
  #allocation1 [shape = 'u32[72,128]{1,0:T(1,128)}', space=vmem, size = 0x9000, scoped, tag = 'internal scratch']
  %s0 = inlined_call_operand.vmem [shape: s32[2,8,1], index: 0, kind: input, shape index: {}]
  %s1 = inlined_call_operand.vmem [shape: s32[2,8,1], index: 1, kind: input, shape index: {}]
  %s2 = inlined_call_operand.vmem [shape: s32[2,1,8], index: 2, kind: input, shape index: {}]
  %s3 = inlined_call_operand.hbm [shape: f32[100,32], index: 3, kind: input, shape index: {}]
  %s4 = inlined_call_operand.vmem [shape: f32[16,32], index: 4, kind: input, shape index: {}]
  %s5 = inlined_call_operand.vmem [shape: f32[2,32], index: 5, kind: input, shape index: {}]
  %s6 = inlined_call_operand.vmem [shape: f32[1,32], index: 6, kind: input, shape index: {}]
  %s7 = inlined_call_operand.vmem [shape: f32[1,32], index: 7, kind: input, shape index: {}, may-alias: {7,21}]
  %s8 = inlined_call_operand.hbm [shape: f32[2,32,96], index: 8, kind: input, shape index: {}]
  %s9 = inlined_call_operand.vmem [shape: f32[2,1,96], index: 9, kind: input, shape index: {}]
  %s10 = inlined_call_operand.hbm [shape: f32[2,32,32], index: 10, kind: input, shape index: {}]
  %s11 = inlined_call_operand.vmem [shape: f32[2,1,32], index: 11, kind: input, shape index: {}, may-alias: {11,13,17,19}]
  %s12 = inlined_call_operand.vmem [shape: f32[2,1,32], index: 12, kind: input, shape index: {}, may-alias: {12,18}]
  %s13 = inlined_call_operand.vmem [shape: f32[2,1,32], index: 13, kind: input, shape index: {}, may-alias: {11,13,17,19}]
  %s14 = inlined_call_operand.hbm [shape: f32[2,32,64], index: 14, kind: input, shape index: {}]
  %s15 = inlined_call_operand.vmem [shape: f32[2,1,64], index: 15, kind: input, shape index: {}]
  %s16 = inlined_call_operand.hbm [shape: f32[2,64,32], index: 16, kind: input, shape index: {}]
  %s17 = inlined_call_operand.vmem [shape: f32[2,1,32], index: 17, kind: input, shape index: {}, may-alias: {11,13,17,19}]
  %s18 = inlined_call_operand.vmem [shape: f32[2,1,32], index: 18, kind: input, shape index: {}, may-alias: {12,18}]
  %s19 = inlined_call_operand.vmem [shape: f32[2,1,32], index: 19, kind: input, shape index: {}, may-alias: {11,13,17,19}]
  %s20 = inlined_call_operand.hbm [shape: f32[32,32], index: 20, kind: input, shape index: {}]
  %s21 = inlined_call_operand.vmem [shape: f32[1,32], index: 21, kind: input, shape index: {}, may-alias: {7,21}]
  %s22 = inlined_call_operand.vmem [shape: f32[32,128], index: 22, kind: input, shape index: {}]
  %s23 = inlined_call_operand.vmem [shape: f32[1,128], index: 23, kind: input, shape index: {}]
  %s24 = inlined_call_operand.hbm [shape: f32[32,32], index: 24, kind: input, shape index: {}, may-alias: {24,25,26}]
  %s25 = inlined_call_operand.hbm [shape: f32[32,32], index: 25, kind: input, shape index: {}, may-alias: {24,25,26}]
  %s26 = inlined_call_operand.hbm [shape: f32[32,32], index: 26, kind: input, shape index: {}, may-alias: {24,25,26}]
  %s27 = inlined_call_operand.vmem [shape: f32[2,9,128], index: 27, kind: output, shape index: {}]
  %s28 = sld [smem:[#allocation0]]
  $region177: #{bert_multitask_forward.1} parent=0
    _
  %s30 = ssub.s32 1, %s28
  %s31 = scalar_select 0, %s30, %s28
  $region1: #{bert_multitask_forward.1} parent=0
    #allocation2 [shape = 'u8[53248]{0}', space=vmem, size = 0xd000, scoped, tag = 'input window, operand 3, single buffered']
    #allocation3 [shape = 's32[2]{0}', space=sflag, size = 0x8, scoped, tag = 'scoped memory for bert_multitask_forward.1']
    #allocation4 [shape = 'u8[32768]{0}', space=vmem, size = 0x8000, scoped, tag = 'input window, operand 8, single buffered']
    #allocation5 [shape = 's32[1]{0}', space=sflag, size = 0x4, scoped, tag = 'scoped memory for bert_multitask_forward.1']
    #allocation6 [shape = 'u8[32768]{0}', space=vmem, size = 0x8000, scoped, tag = 'input window, operand 10, single buffered']
    #allocation7 [shape = 'u8[32768]{0}', space=vmem, size = 0x8000, scoped, tag = 'input window, operand 14, single buffered']
    #allocation8 [shape = 's32[1]{0}', space=sflag, size = 0x4, scoped, tag = 'scoped memory for bert_multitask_forward.1']
    #allocation9 [shape = 'u8[65536]{0}', space=vmem, size = 0x10000, scoped, tag = 'input window, operand 16, single buffered']
    #allocation10 [shape = 'u8[16384]{0}', space=vmem, size = 0x4000, scoped, tag = 'input window, operand 20, single buffered']
    #allocation11 [shape = 's32[1]{0}', space=sflag, size = 0x4, scoped, tag = 'scoped memory for bert_multitask_forward.1']
    #allocation12 [shape = 'u8[16384]{0}', space=vmem, size = 0x4000, scoped, tag = 'input window, operand 24, single buffered']
    #allocation13 [shape = 'u8[16384]{0}', space=vmem, size = 0x4000, scoped, tag = 'input window, operand 25, single buffered']
    #allocation14 [shape = 's32[1]{0}', space=sflag, size = 0x4, scoped, tag = 'scoped memory for bert_multitask_forward.1']
    #allocation15 [shape = 'u8[16384]{0}', space=vmem, size = 0x4000, scoped, tag = 'input window, operand 26, single buffered']
    %32 = vsyncpa [#allocation3], 0
    %33 = vsyncpa [#allocation5], 0
    %34 = vsyncpa [#allocation8], 0
    %35 = vsyncpa [#allocation11], 0
    %36 = vsyncpa [#allocation14], 0
    loop: start=0, step=1, limit=4
    $region2: #{bert_multitask_forward.1} parent=1 // loop_pre_header
      _
    $region3: #{bert_multitask_forward.1} parent=1 // loop_header
      %s38 = sphi 0, %s42
      %p39 = scmp.ge.s32.totalorder %s38, 4
      %s48 = sphi 0, %s50
      %s51 = sphi 0, %s48
      %s52 = sphi 0, %s51
      %s68 = sphi 0, %s52
      %s74 = sphi 0, %s76
      %s77 = sphi 0, %s74
      %s78 = sphi 0, %s77
      %s94 = sphi 0, %s78
      %s100 = sphi 0, %s102
      %s103 = sphi 0, %s100
      %s104 = sphi 0, %s103
      %s120 = sphi 0, %s104
      %s124 = sphi 0, %s124
      %s126 = sphi 0, %s124
      %s127 = sphi 0, %s126
      %s141 = sphi 0, %s127
      %s145 = sphi 0, %s145
      %s147 = sphi 0, %s145
      %s148 = sphi 0, %s147
      %s162 = sphi 0, %s148
      %s166 = sphi 0, %s166
      %s168 = sphi 0, %s166
      %s169 = sphi 0, %s168
      %s183 = sphi 0, %s169
      %s187 = sphi 0, %s187
      %s189 = sphi 0, %s187
      %s190 = sphi 0, %s189
      %s204 = sphi 0, %s190
      %s208 = sphi 0, %s208
      %s210 = sphi 0, %s208
      %s211 = sphi 0, %s210
      %s225 = sphi 0, %s211
      %s229 = sphi 0, %s229
      %s231 = sphi 0, %s229
      %s232 = sphi 0, %s231
      %s246 = sphi 0, %s232
      %s250 = sphi 0, %s250
      %s252 = sphi 0, %s250
      %s253 = sphi 0, %s252
      %s267 = sphi 0, %s253
      %s271 = sphi 0, %s271
      %s273 = sphi 0, %s271
      %s274 = sphi 0, %s273
      %s288 = sphi 0, %s274
      %s292 = sphi 0, %s292
      %s294 = sphi 0, %s292
      %s295 = sphi 0, %s294
      %s309 = sphi 0, %s295
      %s313 = sphi 0, %s313
      %s315 = sphi 0, %s313
      %s316 = sphi 0, %s315
      %s330 = sphi 0, %s316
      %s334 = sphi 0, %s334
      %s336 = sphi 0, %s334
      %s337 = sphi 0, %s336
      %s351 = sphi 0, %s337
      %s355 = sphi 0, %s355
      %s357 = sphi 0, %s355
      %s358 = sphi 0, %s357
      %s372 = sphi 0, %s358
      %s376 = sphi 0, %s376
      %s378 = sphi 0, %s376
      %s379 = sphi 0, %s378
      %s393 = sphi 0, %s379
      %s397 = sphi 0, %s397
      %s399 = sphi 0, %s397
      %s400 = sphi 0, %s399
      %s414 = sphi 0, %s400
      %s418 = sphi 0, %s418
      %s420 = sphi 0, %s418
      %s421 = sphi 0, %s420
      %s435 = sphi 0, %s421
      %s439 = sphi 0, %s439
      %s441 = sphi 0, %s439
      %s442 = sphi 0, %s441
      %s456 = sphi 0, %s442
      %s460 = sphi 0, %s460
      %s462 = sphi 0, %s460
      %s463 = sphi 0, %s462
      %s477 = sphi 0, %s463
      %s481 = sphi 0, %s481
      %s483 = sphi 0, %s481
      %s484 = sphi 0, %s483
      %s498 = sphi 0, %s484
      %s502 = sphi 0, %s502
      %s504 = sphi 0, %s502
      %s505 = sphi 0, %s504
      %s519 = sphi 0, %s505
      %s523 = sphi 0, %s523
      %s525 = sphi 0, %s523
      %s526 = sphi 0, %s525
      %s540 = sphi 0, %s526
      %s544 = sphi 0, %s544
      %s546 = sphi 0, %s544
      %s547 = sphi 0, %s546
      %s561 = sphi 0, %s547
      %s565 = sphi 0, %s565
      %s567 = sphi 0, %s565
      %s568 = sphi 0, %s567
      %s582 = sphi 0, %s568
      %s586 = sphi 0, %s586
      %s588 = sphi 0, %s586
      %s589 = sphi 0, %s588
      %s603 = sphi 0, %s589
      %s607 = sphi 0, %s607
      %s609 = sphi 0, %s607
      %s610 = sphi 0, %s609
      %s624 = sphi 0, %s610
      %s630 = sphi 0, %s632
      %s633 = sphi 0, %s630
      %s634 = sphi 0, %s633
      %s650 = sphi 0, %s634
    $region4: #{bert_multitask_forward.1} parent=1 // loop_header_branch
      %41 = sbr.rel (%p39) target = $region8
    $region5: #{bert_multitask_forward.1} parent=1 // loop_body
      %s43 = ssub.s32 %s38, 1
      %s44 = ssub.s32 %s38, 2
      %s45 = sadd.s32 %s38, 1
      %s46 = ssub.s32 %s38, %s45
      %p47 = scmp.eq.s32.totalorder %s46, 0
      %s49 = sadd.s32 %s48, 1
      %s50 = scalar_select %p47, %s48, %s49
      %p53 = pneg %p47
      %p54 = scmp.eq.s32.totalorder %s38, 1
      %p55 = por %p53, %p54
      %p56 = scmp.ne.s32.totalorder %s48, %s51
      %p57 = scmp.eq.s32.totalorder %s38, 0
      %p58 = por %p56, %p57
      %p59 = scmp.ne.s32.totalorder %s48, %s51
      %p60 = scmp.eq.s32.totalorder %s43, 1
      %p61 = por %p59, %p60
      %p62 = scmp.ne.s32.totalorder %s51, %s52
      %p63 = scmp.eq.s32.totalorder %s43, 0
      %p64 = por %p62, %p63
      %p65 = scmp.ne.s32.totalorder %s51, %s52
      %p66 = scmp.eq.s32.totalorder %s44, 1
      %p67 = por %p65, %p66
      %p69 = scmp.ne.s32.totalorder %s52, %s68
      %p70 = scmp.eq.s32.totalorder %s44, 0
      %p71 = por %p69, %p70
      %s72 = ssub.s32 %s38, %s45
      %p73 = scmp.eq.s32.totalorder %s72, 0
      %s75 = sadd.s32 %s74, 1
      %s76 = scalar_select %p73, %s74, %s75
      %p79 = pneg %p73
      %p80 = scmp.eq.s32.totalorder %s38, 1
      %p81 = por %p79, %p80
      %p82 = scmp.ne.s32.totalorder %s74, %s77
      %p83 = scmp.eq.s32.totalorder %s38, 0
      %p84 = por %p82, %p83
      %p85 = scmp.ne.s32.totalorder %s74, %s77
      %p86 = scmp.eq.s32.totalorder %s43, 1
      %p87 = por %p85, %p86
      %p88 = scmp.ne.s32.totalorder %s77, %s78
      %p89 = scmp.eq.s32.totalorder %s43, 0
      %p90 = por %p88, %p89
      %p91 = scmp.ne.s32.totalorder %s77, %s78
      %p92 = scmp.eq.s32.totalorder %s44, 1
      %p93 = por %p91, %p92
      %p95 = scmp.ne.s32.totalorder %s78, %s94
      %p96 = scmp.eq.s32.totalorder %s44, 0
      %p97 = por %p95, %p96
      %s98 = ssub.s32 %s38, %s45
      %p99 = scmp.eq.s32.totalorder %s98, 0
      %s101 = sadd.s32 %s100, 1
      %s102 = scalar_select %p99, %s100, %s101
      %p105 = pneg %p99
      %p106 = scmp.eq.s32.totalorder %s38, 1
      %p107 = por %p105, %p106
      %p108 = scmp.ne.s32.totalorder %s100, %s103
      %p109 = scmp.eq.s32.totalorder %s38, 0
      %p110 = por %p108, %p109
      %p111 = scmp.ne.s32.totalorder %s100, %s103
      %p112 = scmp.eq.s32.totalorder %s43, 1
      %p113 = por %p111, %p112
      %p114 = scmp.ne.s32.totalorder %s103, %s104
      %p115 = scmp.eq.s32.totalorder %s43, 0
      %p116 = por %p114, %p115
      %p117 = scmp.ne.s32.totalorder %s103, %s104
      %p118 = scmp.eq.s32.totalorder %s44, 1
      %p119 = por %p117, %p118
      %p121 = scmp.ne.s32.totalorder %s104, %s120
      %p122 = scmp.eq.s32.totalorder %s44, 0
      %p123 = por %p121, %p122
      %s125 = sadd.s32 %s124, 1
      %p128 = scmp.eq.s32.totalorder %s38, 1
      %p129 = scmp.ne.s32.totalorder %s124, %s126
      %p130 = scmp.eq.s32.totalorder %s38, 0
      %p131 = por %p129, %p130
      %p132 = scmp.ne.s32.totalorder %s124, %s126
      %p133 = scmp.eq.s32.totalorder %s43, 1
      %p134 = por %p132, %p133
      %p135 = scmp.ne.s32.totalorder %s126, %s127
      %p136 = scmp.eq.s32.totalorder %s43, 0
      %p137 = por %p135, %p136
      %p138 = scmp.ne.s32.totalorder %s126, %s127
      %p139 = scmp.eq.s32.totalorder %s44, 1
      %p140 = por %p138, %p139
      %p142 = scmp.ne.s32.totalorder %s127, %s141
      %p143 = scmp.eq.s32.totalorder %s44, 0
      %p144 = por %p142, %p143
      %s146 = sadd.s32 %s145, 1
      %p149 = scmp.eq.s32.totalorder %s38, 1
      %p150 = scmp.ne.s32.totalorder %s145, %s147
      %p151 = scmp.eq.s32.totalorder %s38, 0
      %p152 = por %p150, %p151
      %p153 = scmp.ne.s32.totalorder %s145, %s147
      %p154 = scmp.eq.s32.totalorder %s43, 1
      %p155 = por %p153, %p154
      %p156 = scmp.ne.s32.totalorder %s147, %s148
      %p157 = scmp.eq.s32.totalorder %s43, 0
      %p158 = por %p156, %p157
      %p159 = scmp.ne.s32.totalorder %s147, %s148
      %p160 = scmp.eq.s32.totalorder %s44, 1
      %p161 = por %p159, %p160
      %p163 = scmp.ne.s32.totalorder %s148, %s162
      %p164 = scmp.eq.s32.totalorder %s44, 0
      %p165 = por %p163, %p164
      %s167 = sadd.s32 %s166, 1
      %p170 = scmp.eq.s32.totalorder %s38, 1
      %p171 = scmp.ne.s32.totalorder %s166, %s168
      %p172 = scmp.eq.s32.totalorder %s38, 0
      %p173 = por %p171, %p172
      %p174 = scmp.ne.s32.totalorder %s166, %s168
      %p175 = scmp.eq.s32.totalorder %s43, 1
      %p176 = por %p174, %p175
      %p177 = scmp.ne.s32.totalorder %s168, %s169
      %p178 = scmp.eq.s32.totalorder %s43, 0
      %p179 = por %p177, %p178
      %p180 = scmp.ne.s32.totalorder %s168, %s169
      %p181 = scmp.eq.s32.totalorder %s44, 1
      %p182 = por %p180, %p181
      %p184 = scmp.ne.s32.totalorder %s169, %s183
      %p185 = scmp.eq.s32.totalorder %s44, 0
      %p186 = por %p184, %p185
      %s188 = sadd.s32 %s187, 1
      %p191 = scmp.eq.s32.totalorder %s38, 1
      %p192 = scmp.ne.s32.totalorder %s187, %s189
      %p193 = scmp.eq.s32.totalorder %s38, 0
      %p194 = por %p192, %p193
      %p195 = scmp.ne.s32.totalorder %s187, %s189
      %p196 = scmp.eq.s32.totalorder %s43, 1
      %p197 = por %p195, %p196
      %p198 = scmp.ne.s32.totalorder %s189, %s190
      %p199 = scmp.eq.s32.totalorder %s43, 0
      %p200 = por %p198, %p199
      %p201 = scmp.ne.s32.totalorder %s189, %s190
      %p202 = scmp.eq.s32.totalorder %s44, 1
      %p203 = por %p201, %p202
      %p205 = scmp.ne.s32.totalorder %s190, %s204
      %p206 = scmp.eq.s32.totalorder %s44, 0
      %p207 = por %p205, %p206
      %s209 = sadd.s32 %s208, 1
      %p212 = scmp.eq.s32.totalorder %s38, 1
      %p213 = scmp.ne.s32.totalorder %s208, %s210
      %p214 = scmp.eq.s32.totalorder %s38, 0
      %p215 = por %p213, %p214
      %p216 = scmp.ne.s32.totalorder %s208, %s210
      %p217 = scmp.eq.s32.totalorder %s43, 1
      %p218 = por %p216, %p217
      %p219 = scmp.ne.s32.totalorder %s210, %s211
      %p220 = scmp.eq.s32.totalorder %s43, 0
      %p221 = por %p219, %p220
      %p222 = scmp.ne.s32.totalorder %s210, %s211
      %p223 = scmp.eq.s32.totalorder %s44, 1
      %p224 = por %p222, %p223
      %p226 = scmp.ne.s32.totalorder %s211, %s225
      %p227 = scmp.eq.s32.totalorder %s44, 0
      %p228 = por %p226, %p227
      %s230 = sadd.s32 %s229, 1
      %p233 = scmp.eq.s32.totalorder %s38, 1
      %p234 = scmp.ne.s32.totalorder %s229, %s231
      %p235 = scmp.eq.s32.totalorder %s38, 0
      %p236 = por %p234, %p235
      %p237 = scmp.ne.s32.totalorder %s229, %s231
      %p238 = scmp.eq.s32.totalorder %s43, 1
      %p239 = por %p237, %p238
      %p240 = scmp.ne.s32.totalorder %s231, %s232
      %p241 = scmp.eq.s32.totalorder %s43, 0
      %p242 = por %p240, %p241
      %p243 = scmp.ne.s32.totalorder %s231, %s232
      %p244 = scmp.eq.s32.totalorder %s44, 1
      %p245 = por %p243, %p244
      %p247 = scmp.ne.s32.totalorder %s232, %s246
      %p248 = scmp.eq.s32.totalorder %s44, 0
      %p249 = por %p247, %p248
      %s251 = sadd.s32 %s250, 1
      %p254 = scmp.eq.s32.totalorder %s38, 1
      %p255 = scmp.ne.s32.totalorder %s250, %s252
      %p256 = scmp.eq.s32.totalorder %s38, 0
      %p257 = por %p255, %p256
      %p258 = scmp.ne.s32.totalorder %s250, %s252
      %p259 = scmp.eq.s32.totalorder %s43, 1
      %p260 = por %p258, %p259
      %p261 = scmp.ne.s32.totalorder %s252, %s253
      %p262 = scmp.eq.s32.totalorder %s43, 0
      %p263 = por %p261, %p262
      %p264 = scmp.ne.s32.totalorder %s252, %s253
      %p265 = scmp.eq.s32.totalorder %s44, 1
      %p266 = por %p264, %p265
      %p268 = scmp.ne.s32.totalorder %s253, %s267
      %p269 = scmp.eq.s32.totalorder %s44, 0
      %p270 = por %p268, %p269
      %s272 = sadd.s32 %s271, 1
      %p275 = scmp.eq.s32.totalorder %s38, 1
      %p276 = scmp.ne.s32.totalorder %s271, %s273
      %p277 = scmp.eq.s32.totalorder %s38, 0
      %p278 = por %p276, %p277
      %p279 = scmp.ne.s32.totalorder %s271, %s273
      %p280 = scmp.eq.s32.totalorder %s43, 1
      %p281 = por %p279, %p280
      %p282 = scmp.ne.s32.totalorder %s273, %s274
      %p283 = scmp.eq.s32.totalorder %s43, 0
      %p284 = por %p282, %p283
      %p285 = scmp.ne.s32.totalorder %s273, %s274
      %p286 = scmp.eq.s32.totalorder %s44, 1
      %p287 = por %p285, %p286
      %p289 = scmp.ne.s32.totalorder %s274, %s288
      %p290 = scmp.eq.s32.totalorder %s44, 0
      %p291 = por %p289, %p290
      %s293 = sadd.s32 %s292, 1
      %p296 = scmp.eq.s32.totalorder %s38, 1
      %p297 = scmp.ne.s32.totalorder %s292, %s294
      %p298 = scmp.eq.s32.totalorder %s38, 0
      %p299 = por %p297, %p298
      %p300 = scmp.ne.s32.totalorder %s292, %s294
      %p301 = scmp.eq.s32.totalorder %s43, 1
      %p302 = por %p300, %p301
      %p303 = scmp.ne.s32.totalorder %s294, %s295
      %p304 = scmp.eq.s32.totalorder %s43, 0
      %p305 = por %p303, %p304
      %p306 = scmp.ne.s32.totalorder %s294, %s295
      %p307 = scmp.eq.s32.totalorder %s44, 1
      %p308 = por %p306, %p307
      %p310 = scmp.ne.s32.totalorder %s295, %s309
      %p311 = scmp.eq.s32.totalorder %s44, 0
      %p312 = por %p310, %p311
      %s314 = sadd.s32 %s313, 1
      %p317 = scmp.eq.s32.totalorder %s38, 1
      %p318 = scmp.ne.s32.totalorder %s313, %s315
      %p319 = scmp.eq.s32.totalorder %s38, 0
      %p320 = por %p318, %p319
      %p321 = scmp.ne.s32.totalorder %s313, %s315
      %p322 = scmp.eq.s32.totalorder %s43, 1
      %p323 = por %p321, %p322
      %p324 = scmp.ne.s32.totalorder %s315, %s316
      %p325 = scmp.eq.s32.totalorder %s43, 0
      %p326 = por %p324, %p325
      %p327 = scmp.ne.s32.totalorder %s315, %s316
      %p328 = scmp.eq.s32.totalorder %s44, 1
      %p329 = por %p327, %p328
      %p331 = scmp.ne.s32.totalorder %s316, %s330
      %p332 = scmp.eq.s32.totalorder %s44, 0
      %p333 = por %p331, %p332
      %s335 = sadd.s32 %s334, 1
      %p338 = scmp.eq.s32.totalorder %s38, 1
      %p339 = scmp.ne.s32.totalorder %s334, %s336
      %p340 = scmp.eq.s32.totalorder %s38, 0
      %p341 = por %p339, %p340
      %p342 = scmp.ne.s32.totalorder %s334, %s336
      %p343 = scmp.eq.s32.totalorder %s43, 1
      %p344 = por %p342, %p343
      %p345 = scmp.ne.s32.totalorder %s336, %s337
      %p346 = scmp.eq.s32.totalorder %s43, 0
      %p347 = por %p345, %p346
      %p348 = scmp.ne.s32.totalorder %s336, %s337
      %p349 = scmp.eq.s32.totalorder %s44, 1
      %p350 = por %p348, %p349
      %p352 = scmp.ne.s32.totalorder %s337, %s351
      %p353 = scmp.eq.s32.totalorder %s44, 0
      %p354 = por %p352, %p353
      %s356 = sadd.s32 %s355, 1
      %p359 = scmp.eq.s32.totalorder %s38, 1
      %p360 = scmp.ne.s32.totalorder %s355, %s357
      %p361 = scmp.eq.s32.totalorder %s38, 0
      %p362 = por %p360, %p361
      %p363 = scmp.ne.s32.totalorder %s355, %s357
      %p364 = scmp.eq.s32.totalorder %s43, 1
      %p365 = por %p363, %p364
      %p366 = scmp.ne.s32.totalorder %s357, %s358
      %p367 = scmp.eq.s32.totalorder %s43, 0
      %p368 = por %p366, %p367
      %p369 = scmp.ne.s32.totalorder %s357, %s358
      %p370 = scmp.eq.s32.totalorder %s44, 1
      %p371 = por %p369, %p370
      %p373 = scmp.ne.s32.totalorder %s358, %s372
      %p374 = scmp.eq.s32.totalorder %s44, 0
      %p375 = por %p373, %p374
      %s377 = sadd.s32 %s376, 1
      %p380 = scmp.eq.s32.totalorder %s38, 1
      %p381 = scmp.ne.s32.totalorder %s376, %s378
      %p382 = scmp.eq.s32.totalorder %s38, 0
      %p383 = por %p381, %p382
      %p384 = scmp.ne.s32.totalorder %s376, %s378
      %p385 = scmp.eq.s32.totalorder %s43, 1
      %p386 = por %p384, %p385
      %p387 = scmp.ne.s32.totalorder %s378, %s379
      %p388 = scmp.eq.s32.totalorder %s43, 0
      %p389 = por %p387, %p388
      %p390 = scmp.ne.s32.totalorder %s378, %s379
      %p391 = scmp.eq.s32.totalorder %s44, 1
      %p392 = por %p390, %p391
      %p394 = scmp.ne.s32.totalorder %s379, %s393
      %p395 = scmp.eq.s32.totalorder %s44, 0
      %p396 = por %p394, %p395
      %s398 = sadd.s32 %s397, 1
      %p401 = scmp.eq.s32.totalorder %s38, 1
      %p402 = scmp.ne.s32.totalorder %s397, %s399
      %p403 = scmp.eq.s32.totalorder %s38, 0
      %p404 = por %p402, %p403
      %p405 = scmp.ne.s32.totalorder %s397, %s399
      %p406 = scmp.eq.s32.totalorder %s43, 1
      %p407 = por %p405, %p406
      %p408 = scmp.ne.s32.totalorder %s399, %s400
      %p409 = scmp.eq.s32.totalorder %s43, 0
      %p410 = por %p408, %p409
      %p411 = scmp.ne.s32.totalorder %s399, %s400
      %p412 = scmp.eq.s32.totalorder %s44, 1
      %p413 = por %p411, %p412
      %p415 = scmp.ne.s32.totalorder %s400, %s414
      %p416 = scmp.eq.s32.totalorder %s44, 0
      %p417 = por %p415, %p416
      %s419 = sadd.s32 %s418, 1
      %p422 = scmp.eq.s32.totalorder %s38, 1
      %p423 = scmp.ne.s32.totalorder %s418, %s420
      %p424 = scmp.eq.s32.totalorder %s38, 0
      %p425 = por %p423, %p424
      %p426 = scmp.ne.s32.totalorder %s418, %s420
      %p427 = scmp.eq.s32.totalorder %s43, 1
      %p428 = por %p426, %p427
      %p429 = scmp.ne.s32.totalorder %s420, %s421
      %p430 = scmp.eq.s32.totalorder %s43, 0
      %p431 = por %p429, %p430
      %p432 = scmp.ne.s32.totalorder %s420, %s421
      %p433 = scmp.eq.s32.totalorder %s44, 1
      %p434 = por %p432, %p433
      %p436 = scmp.ne.s32.totalorder %s421, %s435
      %p437 = scmp.eq.s32.totalorder %s44, 0
      %p438 = por %p436, %p437
      %s440 = sadd.s32 %s439, 1
      %p443 = scmp.eq.s32.totalorder %s38, 1
      %p444 = scmp.ne.s32.totalorder %s439, %s441
      %p445 = scmp.eq.s32.totalorder %s38, 0
      %p446 = por %p444, %p445
      %p447 = scmp.ne.s32.totalorder %s439, %s441
      %p448 = scmp.eq.s32.totalorder %s43, 1
      %p449 = por %p447, %p448
      %p450 = scmp.ne.s32.totalorder %s441, %s442
      %p451 = scmp.eq.s32.totalorder %s43, 0
      %p452 = por %p450, %p451
      %p453 = scmp.ne.s32.totalorder %s441, %s442
      %p454 = scmp.eq.s32.totalorder %s44, 1
      %p455 = por %p453, %p454
      %p457 = scmp.ne.s32.totalorder %s442, %s456
      %p458 = scmp.eq.s32.totalorder %s44, 0
      %p459 = por %p457, %p458
      %s461 = sadd.s32 %s460, 1
      %p464 = scmp.eq.s32.totalorder %s38, 1
      %p465 = scmp.ne.s32.totalorder %s460, %s462
      %p466 = scmp.eq.s32.totalorder %s38, 0
      %p467 = por %p465, %p466
      %p468 = scmp.ne.s32.totalorder %s460, %s462
      %p469 = scmp.eq.s32.totalorder %s43, 1
      %p470 = por %p468, %p469
      %p471 = scmp.ne.s32.totalorder %s462, %s463
      %p472 = scmp.eq.s32.totalorder %s43, 0
      %p473 = por %p471, %p472
      %p474 = scmp.ne.s32.totalorder %s462, %s463
      %p475 = scmp.eq.s32.totalorder %s44, 1
      %p476 = por %p474, %p475
      %p478 = scmp.ne.s32.totalorder %s463, %s477
      %p479 = scmp.eq.s32.totalorder %s44, 0
      %p480 = por %p478, %p479
      %s482 = sadd.s32 %s481, 1
      %p485 = scmp.eq.s32.totalorder %s38, 1
      %p486 = scmp.ne.s32.totalorder %s481, %s483
      %p487 = scmp.eq.s32.totalorder %s38, 0
      %p488 = por %p486, %p487
      %p489 = scmp.ne.s32.totalorder %s481, %s483
      %p490 = scmp.eq.s32.totalorder %s43, 1
      %p491 = por %p489, %p490
      %p492 = scmp.ne.s32.totalorder %s483, %s484
      %p493 = scmp.eq.s32.totalorder %s43, 0
      %p494 = por %p492, %p493
      %p495 = scmp.ne.s32.totalorder %s483, %s484
      %p496 = scmp.eq.s32.totalorder %s44, 1
      %p497 = por %p495, %p496
      %p499 = scmp.ne.s32.totalorder %s484, %s498
      %p500 = scmp.eq.s32.totalorder %s44, 0
      %p501 = por %p499, %p500
      %s503 = sadd.s32 %s502, 1
      %p506 = scmp.eq.s32.totalorder %s38, 1
      %p507 = scmp.ne.s32.totalorder %s502, %s504
      %p508 = scmp.eq.s32.totalorder %s38, 0
      %p509 = por %p507, %p508
      %p510 = scmp.ne.s32.totalorder %s502, %s504
      %p511 = scmp.eq.s32.totalorder %s43, 1
      %p512 = por %p510, %p511
      %p513 = scmp.ne.s32.totalorder %s504, %s505
      %p514 = scmp.eq.s32.totalorder %s43, 0
      %p515 = por %p513, %p514
      %p516 = scmp.ne.s32.totalorder %s504, %s505
      %p517 = scmp.eq.s32.totalorder %s44, 1
      %p518 = por %p516, %p517
      %p520 = scmp.ne.s32.totalorder %s505, %s519
      %p521 = scmp.eq.s32.totalorder %s44, 0
      %p522 = por %p520, %p521
      %s524 = sadd.s32 %s523, 1
      %p527 = scmp.eq.s32.totalorder %s38, 1
      %p528 = scmp.ne.s32.totalorder %s523, %s525
      %p529 = scmp.eq.s32.totalorder %s38, 0
      %p530 = por %p528, %p529
      %p531 = scmp.ne.s32.totalorder %s523, %s525
      %p532 = scmp.eq.s32.totalorder %s43, 1
      %p533 = por %p531, %p532
      %p534 = scmp.ne.s32.totalorder %s525, %s526
      %p535 = scmp.eq.s32.totalorder %s43, 0
      %p536 = por %p534, %p535
      %p537 = scmp.ne.s32.totalorder %s525, %s526
      %p538 = scmp.eq.s32.totalorder %s44, 1
      %p539 = por %p537, %p538
      %p541 = scmp.ne.s32.totalorder %s526, %s540
      %p542 = scmp.eq.s32.totalorder %s44, 0
      %p543 = por %p541, %p542
      %s545 = sadd.s32 %s544, 1
      %p548 = scmp.eq.s32.totalorder %s38, 1
      %p549 = scmp.ne.s32.totalorder %s544, %s546
      %p550 = scmp.eq.s32.totalorder %s38, 0
      %p551 = por %p549, %p550
      %p552 = scmp.ne.s32.totalorder %s544, %s546
      %p553 = scmp.eq.s32.totalorder %s43, 1
      %p554 = por %p552, %p553
      %p555 = scmp.ne.s32.totalorder %s546, %s547
      %p556 = scmp.eq.s32.totalorder %s43, 0
      %p557 = por %p555, %p556
      %p558 = scmp.ne.s32.totalorder %s546, %s547
      %p559 = scmp.eq.s32.totalorder %s44, 1
      %p560 = por %p558, %p559
      %p562 = scmp.ne.s32.totalorder %s547, %s561
      %p563 = scmp.eq.s32.totalorder %s44, 0
      %p564 = por %p562, %p563
      %s566 = sadd.s32 %s565, 1
      %p569 = scmp.eq.s32.totalorder %s38, 1
      %p570 = scmp.ne.s32.totalorder %s565, %s567
      %p571 = scmp.eq.s32.totalorder %s38, 0
      %p572 = por %p570, %p571
      %p573 = scmp.ne.s32.totalorder %s565, %s567
      %p574 = scmp.eq.s32.totalorder %s43, 1
      %p575 = por %p573, %p574
      %p576 = scmp.ne.s32.totalorder %s567, %s568
      %p577 = scmp.eq.s32.totalorder %s43, 0
      %p578 = por %p576, %p577
      %p579 = scmp.ne.s32.totalorder %s567, %s568
      %p580 = scmp.eq.s32.totalorder %s44, 1
      %p581 = por %p579, %p580
      %p583 = scmp.ne.s32.totalorder %s568, %s582
      %p584 = scmp.eq.s32.totalorder %s44, 0
      %p585 = por %p583, %p584
      %s587 = sadd.s32 %s586, 1
      %p590 = scmp.eq.s32.totalorder %s38, 1
      %p591 = scmp.ne.s32.totalorder %s586, %s588
      %p592 = scmp.eq.s32.totalorder %s38, 0
      %p593 = por %p591, %p592
      %p594 = scmp.ne.s32.totalorder %s586, %s588
      %p595 = scmp.eq.s32.totalorder %s43, 1
      %p596 = por %p594, %p595
      %p597 = scmp.ne.s32.totalorder %s588, %s589
      %p598 = scmp.eq.s32.totalorder %s43, 0
      %p599 = por %p597, %p598
      %p600 = scmp.ne.s32.totalorder %s588, %s589
      %p601 = scmp.eq.s32.totalorder %s44, 1
      %p602 = por %p600, %p601
      %p604 = scmp.ne.s32.totalorder %s589, %s603
      %p605 = scmp.eq.s32.totalorder %s44, 0
      %p606 = por %p604, %p605
      %s608 = sadd.s32 %s607, 1
      %p611 = scmp.eq.s32.totalorder %s38, 1
      %p612 = scmp.ne.s32.totalorder %s607, %s609
      %p613 = scmp.eq.s32.totalorder %s38, 0
      %p614 = por %p612, %p613
      %p615 = scmp.ne.s32.totalorder %s607, %s609
      %p616 = scmp.eq.s32.totalorder %s43, 1
      %p617 = por %p615, %p616
      %p618 = scmp.ne.s32.totalorder %s609, %s610
      %p619 = scmp.eq.s32.totalorder %s43, 0
      %p620 = por %p618, %p619
      %p621 = scmp.ne.s32.totalorder %s609, %s610
      %p622 = scmp.eq.s32.totalorder %s44, 1
      %p623 = por %p621, %p622
      %p625 = scmp.ne.s32.totalorder %s610, %s624
      %p626 = scmp.eq.s32.totalorder %s44, 0
      %p627 = por %p625, %p626
      %s628 = ssub.s32 %s38, %s45
      %p629 = scmp.eq.s32.totalorder %s628, 0
      %s631 = sadd.s32 %s630, 1
      %s632 = scalar_select %p629, %s630, %s631
      %p635 = pneg %p629
      %p636 = scmp.eq.s32.totalorder %s38, 1
      %p637 = por %p635, %p636
      %p638 = scmp.ne.s32.totalorder %s630, %s633
      %p639 = scmp.eq.s32.totalorder %s38, 0
      %p640 = por %p638, %p639
      %p641 = scmp.ne.s32.totalorder %s630, %s633
      %p642 = scmp.eq.s32.totalorder %s43, 1
      %p643 = por %p641, %p642
      %p644 = scmp.ne.s32.totalorder %s633, %s634
      %p645 = scmp.eq.s32.totalorder %s43, 0
      %p646 = por %p644, %p645
      %p647 = scmp.ne.s32.totalorder %s633, %s634
      %p648 = scmp.eq.s32.totalorder %s44, 1
      %p649 = por %p647, %p648
      %p651 = scmp.ne.s32.totalorder %s634, %s650
      %p652 = scmp.eq.s32.totalorder %s44, 0
      %p653 = por %p651, %p652
      %p654 = scmp.le.s32.totalorder 1, %s38
      %p655 = scmp.lt.s32.totalorder %s38, 3
      %p656 = pnand %p654, %p655
      %p657 = pneg %p656
      // Predicated region
      $region9: #{bert_multitask_forward.1} parent=5 // pred_check
        _
      $region10: #{bert_multitask_forward.1} parent=5 // pred_check_branch
        %659 = sbr.rel (%p656) target = $region12
      $region11: #{bert_multitask_forward.1} parent=5 // pred_region
        %s660 = ssub.s32 %s38, 1
        // Predicated region
        $region13: #{bert_multitask_forward.1} parent=11 // pred_check
          %p661 = pneg %p137
        $region14: #{bert_multitask_forward.1} parent=11 // pred_check_branch
          %663 = sbr.rel (%p661) target = $region16
        $region15: #{bert_multitask_forward.1} parent=11 // pred_region
          %665 = vsyncadd [#allocation3], 0
          %s666 = sshll.u32 %s3, 4
          %s667 = int_to_ptr.hbm [resolvable:$true] %s666
          %s668 = sshll.u32 [#allocation2], 4
          %s669 = int_to_ptr.vmem [resolvable:$true] %s668
          %674 = dma.hbm_to_vmem [thread:$0]  %s667, 1664, %s669, [#allocation3], 128, 128, 8
        $region16: #{bert_multitask_forward.1} parent=11 // pred_fallthru
          _
        // Predicated region
        $region17: #{bert_multitask_forward.1} parent=11 // pred_check
          %p675 = pneg %p158
        $region18: #{bert_multitask_forward.1} parent=11 // pred_check_branch
          %677 = sbr.rel (%p675) target = $region20
        $region19: #{bert_multitask_forward.1} parent=11 // pred_region
          _
        $region20: #{bert_multitask_forward.1} parent=11 // pred_fallthru
          _
        // Predicated region
        $region21: #{bert_multitask_forward.1} parent=11 // pred_check
          %p678 = pneg %p179
        $region22: #{bert_multitask_forward.1} parent=11 // pred_check_branch
          %680 = sbr.rel (%p678) target = $region24
        $region23: #{bert_multitask_forward.1} parent=11 // pred_region
          _
        $region24: #{bert_multitask_forward.1} parent=11 // pred_fallthru
          _
        // Predicated region
        $region25: #{bert_multitask_forward.1} parent=11 // pred_check
          %p681 = pneg %p200
        $region26: #{bert_multitask_forward.1} parent=11 // pred_check_branch
          %683 = sbr.rel (%p681) target = $region28
        $region27: #{bert_multitask_forward.1} parent=11 // pred_region
          _
        $region28: #{bert_multitask_forward.1} parent=11 // pred_fallthru
          _
        // Predicated region
        $region29: #{bert_multitask_forward.1} parent=11 // pred_check
          %p684 = pneg %p221
        $region30: #{bert_multitask_forward.1} parent=11 // pred_check_branch
          %686 = sbr.rel (%p684) target = $region32
        $region31: #{bert_multitask_forward.1} parent=11 // pred_region
          _
        $region32: #{bert_multitask_forward.1} parent=11 // pred_fallthru
          _
        // Predicated region
        $region33: #{bert_multitask_forward.1} parent=11 // pred_check
          %p687 = pneg %p242
        $region34: #{bert_multitask_forward.1} parent=11 // pred_check_branch
          %689 = sbr.rel (%p687) target = $region36
        $region35: #{bert_multitask_forward.1} parent=11 // pred_region
          %691 = vsyncadd [#allocation5], 0
          %s692 = sshll.u32 %s8, 4
          %s693 = int_to_ptr.hbm [resolvable:$true] %s692
          %s694 = sshll.u32 [#allocation4], 4
          %s695 = int_to_ptr.vmem [resolvable:$true] %s694
          %700 = dma.hbm_to_vmem [thread:$0]  %s693, 1024, %s695, [#allocation5], 128, 128, 8
        $region36: #{bert_multitask_forward.1} parent=11 // pred_fallthru
          _
        // Predicated region
        $region37: #{bert_multitask_forward.1} parent=11 // pred_check
          %p701 = pneg %p263
        $region38: #{bert_multitask_forward.1} parent=11 // pred_check_branch
          %703 = sbr.rel (%p701) target = $region40
        $region39: #{bert_multitask_forward.1} parent=11 // pred_region
          _
        $region40: #{bert_multitask_forward.1} parent=11 // pred_fallthru
          _
        // Predicated region
        $region41: #{bert_multitask_forward.1} parent=11 // pred_check
          %p704 = pneg %p284
        $region42: #{bert_multitask_forward.1} parent=11 // pred_check_branch
          %706 = sbr.rel (%p704) target = $region44
        $region43: #{bert_multitask_forward.1} parent=11 // pred_region
          %708 = vsyncadd [#allocation5], 0
          %s709 = sshll.u32 %s10, 4
          %s710 = int_to_ptr.hbm [resolvable:$true] %s709
          %s711 = sshll.u32 [#allocation6], 4
          %s712 = int_to_ptr.vmem [resolvable:$true] %s711
          %717 = dma.hbm_to_vmem [thread:$0]  %s710, 1024, %s712, [#allocation5], 128, 128, 8
        $region44: #{bert_multitask_forward.1} parent=11 // pred_fallthru
          _
        // Predicated region
        $region45: #{bert_multitask_forward.1} parent=11 // pred_check
          %p718 = pneg %p305
        $region46: #{bert_multitask_forward.1} parent=11 // pred_check_branch
          %720 = sbr.rel (%p718) target = $region48
        $region47: #{bert_multitask_forward.1} parent=11 // pred_region
          _
        $region48: #{bert_multitask_forward.1} parent=11 // pred_fallthru
          _
        // Predicated region
        $region49: #{bert_multitask_forward.1} parent=11 // pred_check
          %p721 = pneg %p326
        $region50: #{bert_multitask_forward.1} parent=11 // pred_check_branch
          %723 = sbr.rel (%p721) target = $region52
        $region51: #{bert_multitask_forward.1} parent=11 // pred_region
          _
        $region52: #{bert_multitask_forward.1} parent=11 // pred_fallthru
          _
        // Predicated region
        $region53: #{bert_multitask_forward.1} parent=11 // pred_check
          %p724 = pneg %p347
        $region54: #{bert_multitask_forward.1} parent=11 // pred_check_branch
          %726 = sbr.rel (%p724) target = $region56
        $region55: #{bert_multitask_forward.1} parent=11 // pred_region
          _
        $region56: #{bert_multitask_forward.1} parent=11 // pred_fallthru
          _
        // Predicated region
        $region57: #{bert_multitask_forward.1} parent=11 // pred_check
          %p727 = pneg %p368
        $region58: #{bert_multitask_forward.1} parent=11 // pred_check_branch
          %729 = sbr.rel (%p727) target = $region60
        $region59: #{bert_multitask_forward.1} parent=11 // pred_region
          %731 = vsyncadd [#allocation8], 0
          %s732 = sshll.u32 %s14, 4
          %s733 = int_to_ptr.hbm [resolvable:$true] %s732
          %s734 = sshll.u32 [#allocation7], 4
          %s735 = int_to_ptr.vmem [resolvable:$true] %s734
          %740 = dma.hbm_to_vmem [thread:$0]  %s733, 1024, %s735, [#allocation8], 128, 128, 8
        $region60: #{bert_multitask_forward.1} parent=11 // pred_fallthru
          _
        // Predicated region
        $region61: #{bert_multitask_forward.1} parent=11 // pred_check
          %p741 = pneg %p389
        $region62: #{bert_multitask_forward.1} parent=11 // pred_check_branch
          %743 = sbr.rel (%p741) target = $region64
        $region63: #{bert_multitask_forward.1} parent=11 // pred_region
          _
        $region64: #{bert_multitask_forward.1} parent=11 // pred_fallthru
          _
        // Predicated region
        $region65: #{bert_multitask_forward.1} parent=11 // pred_check
          %p744 = pneg %p410
        $region66: #{bert_multitask_forward.1} parent=11 // pred_check_branch
          %746 = sbr.rel (%p744) target = $region68
        $region67: #{bert_multitask_forward.1} parent=11 // pred_region
          %748 = vsyncadd [#allocation8], 0
          %s749 = sshll.u32 %s16, 4
          %s750 = int_to_ptr.hbm [resolvable:$true] %s749
          %s751 = sshll.u32 [#allocation9], 4
          %s752 = int_to_ptr.vmem [resolvable:$true] %s751
          %757 = dma.hbm_to_vmem [thread:$0]  %s750, 2048, %s752, [#allocation8], 128, 128, 8
        $region68: #{bert_multitask_forward.1} parent=11 // pred_fallthru
          _
        // Predicated region
        $region69: #{bert_multitask_forward.1} parent=11 // pred_check
          %p758 = pneg %p431
        $region70: #{bert_multitask_forward.1} parent=11 // pred_check_branch
          %760 = sbr.rel (%p758) target = $region72
        $region71: #{bert_multitask_forward.1} parent=11 // pred_region
          _
        $region72: #{bert_multitask_forward.1} parent=11 // pred_fallthru
          _
        // Predicated region
        $region73: #{bert_multitask_forward.1} parent=11 // pred_check
          %p761 = pneg %p452
        $region74: #{bert_multitask_forward.1} parent=11 // pred_check_branch
          %763 = sbr.rel (%p761) target = $region76
        $region75: #{bert_multitask_forward.1} parent=11 // pred_region
          _
        $region76: #{bert_multitask_forward.1} parent=11 // pred_fallthru
          _
        // Predicated region
        $region77: #{bert_multitask_forward.1} parent=11 // pred_check
          %p764 = pneg %p473
        $region78: #{bert_multitask_forward.1} parent=11 // pred_check_branch
          %766 = sbr.rel (%p764) target = $region80
        $region79: #{bert_multitask_forward.1} parent=11 // pred_region
          _
        $region80: #{bert_multitask_forward.1} parent=11 // pred_fallthru
          _
        // Predicated region
        $region81: #{bert_multitask_forward.1} parent=11 // pred_check
          %p767 = pneg %p494
        $region82: #{bert_multitask_forward.1} parent=11 // pred_check_branch
          %769 = sbr.rel (%p767) target = $region84
        $region83: #{bert_multitask_forward.1} parent=11 // pred_region
          %771 = vsyncadd [#allocation11], 0
          %s772 = sshll.u32 %s20, 4
          %s773 = int_to_ptr.hbm [resolvable:$true] %s772
          %s774 = sshll.u32 [#allocation10], 4
          %s775 = int_to_ptr.vmem [resolvable:$true] %s774
          %780 = dma.hbm_to_vmem [thread:$0]  %s773, 512, %s775, [#allocation11], 128, 128, 8
        $region84: #{bert_multitask_forward.1} parent=11 // pred_fallthru
          _
        // Predicated region
        $region85: #{bert_multitask_forward.1} parent=11 // pred_check
          %p781 = pneg %p515
        $region86: #{bert_multitask_forward.1} parent=11 // pred_check_branch
          %783 = sbr.rel (%p781) target = $region88
        $region87: #{bert_multitask_forward.1} parent=11 // pred_region
          _
        $region88: #{bert_multitask_forward.1} parent=11 // pred_fallthru
          _
        // Predicated region
        $region89: #{bert_multitask_forward.1} parent=11 // pred_check
          %p784 = pneg %p536
        $region90: #{bert_multitask_forward.1} parent=11 // pred_check_branch
          %786 = sbr.rel (%p784) target = $region92
        $region91: #{bert_multitask_forward.1} parent=11 // pred_region
          _
        $region92: #{bert_multitask_forward.1} parent=11 // pred_fallthru
          _
        // Predicated region
        $region93: #{bert_multitask_forward.1} parent=11 // pred_check
          %p787 = pneg %p557
        $region94: #{bert_multitask_forward.1} parent=11 // pred_check_branch
          %789 = sbr.rel (%p787) target = $region96
        $region95: #{bert_multitask_forward.1} parent=11 // pred_region
          _
        $region96: #{bert_multitask_forward.1} parent=11 // pred_fallthru
          _
        // Predicated region
        $region97: #{bert_multitask_forward.1} parent=11 // pred_check
          %p790 = pneg %p578
        $region98: #{bert_multitask_forward.1} parent=11 // pred_check_branch
          %792 = sbr.rel (%p790) target = $region100
        $region99: #{bert_multitask_forward.1} parent=11 // pred_region
          %794 = vsyncadd [#allocation11], 0
          %s795 = sshll.u32 %s24, 4
          %s796 = int_to_ptr.hbm [resolvable:$true] %s795
          %s797 = sshll.u32 [#allocation12], 4
          %s798 = int_to_ptr.vmem [resolvable:$true] %s797
          %803 = dma.hbm_to_vmem [thread:$0]  %s796, 512, %s798, [#allocation11], 128, 128, 8
        $region100: #{bert_multitask_forward.1} parent=11 // pred_fallthru
          _
        // Predicated region
        $region101: #{bert_multitask_forward.1} parent=11 // pred_check
          %p804 = pneg %p599
        $region102: #{bert_multitask_forward.1} parent=11 // pred_check_branch
          %806 = sbr.rel (%p804) target = $region104
        $region103: #{bert_multitask_forward.1} parent=11 // pred_region
          %808 = vsyncadd [#allocation14], 0
          %s809 = sshll.u32 %s25, 4
          %s810 = int_to_ptr.hbm [resolvable:$true] %s809
          %s811 = sshll.u32 [#allocation13], 4
          %s812 = int_to_ptr.vmem [resolvable:$true] %s811
          %817 = dma.hbm_to_vmem [thread:$0]  %s810, 512, %s812, [#allocation14], 128, 128, 8
        $region104: #{bert_multitask_forward.1} parent=11 // pred_fallthru
          _
        // Predicated region
        $region105: #{bert_multitask_forward.1} parent=11 // pred_check
          %p818 = pneg %p620
        $region106: #{bert_multitask_forward.1} parent=11 // pred_check_branch
          %820 = sbr.rel (%p818) target = $region108
        $region107: #{bert_multitask_forward.1} parent=11 // pred_region
          %822 = vsyncadd [#allocation14], 0
          %s823 = sshll.u32 %s26, 4
          %s824 = int_to_ptr.hbm [resolvable:$true] %s823
          %s825 = sshll.u32 [#allocation15], 4
          %s826 = int_to_ptr.vmem [resolvable:$true] %s825
          %831 = dma.hbm_to_vmem [thread:$0]  %s824, 512, %s826, [#allocation14], 128, 128, 8
        $region108: #{bert_multitask_forward.1} parent=11 // pred_fallthru
          _
      $region12: #{bert_multitask_forward.1} parent=5 // pred_fallthru
        _
      %p832 = scmp.lt.s32.totalorder %s38, 2
      // Predicated region
      $region109: #{bert_multitask_forward.1} parent=5 // pred_check
        %p833 = pneg %p832
      $region110: #{bert_multitask_forward.1} parent=5 // pred_check_branch
        %835 = sbr.rel (%p833) target = $region112
      $region111: #{bert_multitask_forward.1} parent=5 // pred_region
        // Predicated region
        $region113: #{bert_multitask_forward.1} parent=111 // pred_check
          %p836 = pneg %p58
        $region114: #{bert_multitask_forward.1} parent=111 // pred_check_branch
          %838 = sbr.rel (%p836) target = $region116
        $region115: #{bert_multitask_forward.1} parent=111 // pred_region
          %p839 = scmp.lt.s32.totalorder %s38, 1
          %s840 = scalar_select %p839, %s38, 1
          %s841 = smul.addr %s840, 8
          %s842 = scalar_lea.vmem %s0, %s841
        $region116: #{bert_multitask_forward.1} parent=111 // pred_fallthru
          _
        // Predicated region
        $region117: #{bert_multitask_forward.1} parent=111 // pred_check
          %p843 = pneg %p84
        $region118: #{bert_multitask_forward.1} parent=111 // pred_check_branch
          %845 = sbr.rel (%p843) target = $region120
        $region119: #{bert_multitask_forward.1} parent=111 // pred_region
          %p846 = scmp.lt.s32.totalorder %s38, 1
          %s847 = scalar_select %p846, %s38, 1
          %s848 = smul.addr %s847, 8
          %s849 = scalar_lea.vmem %s1, %s848
        $region120: #{bert_multitask_forward.1} parent=111 // pred_fallthru
          _
        // Predicated region
        $region121: #{bert_multitask_forward.1} parent=111 // pred_check
          %p850 = pneg %p110
        $region122: #{bert_multitask_forward.1} parent=111 // pred_check_branch
          %852 = sbr.rel (%p850) target = $region124
        $region123: #{bert_multitask_forward.1} parent=111 // pred_region
          %p853 = scmp.lt.s32.totalorder %s38, 1
          %s854 = scalar_select %p853, %s38, 1
          %s855 = scalar_lea.vmem %s2, %s854
        $region124: #{bert_multitask_forward.1} parent=111 // pred_fallthru
          _
      $region112: #{bert_multitask_forward.1} parent=5 // pred_fallthru
        _
      %p856 = scmp.le.s32.totalorder 1, %s38
      %p857 = scmp.lt.s32.totalorder %s38, 3
      %p858 = pnand %p856, %p857
      %p859 = pneg %p858
      // Predicated region
      $region125: #{bert_multitask_forward.1} parent=5 // pred_check
        _
      $region126: #{bert_multitask_forward.1} parent=5 // pred_check_branch
        %861 = sbr.rel (%p858) target = $region128
      $region127: #{bert_multitask_forward.1} parent=5 // pred_region
        %s862 = ssub.s32 %s38, 1
        // Predicated region
        $region129: #{bert_multitask_forward.1} parent=127 // pred_check
          %p863 = pneg %p137
        $region130: #{bert_multitask_forward.1} parent=127 // pred_check_branch
          %865 = sbr.rel (%p863) target = $region132
        $region131: #{bert_multitask_forward.1} parent=127 // pred_region
          %867 = dma.done [#allocation3], 1664
        $region132: #{bert_multitask_forward.1} parent=127 // pred_fallthru
          _
        // Predicated region
        $region133: #{bert_multitask_forward.1} parent=127 // pred_check
          %p868 = pneg %p242
        $region134: #{bert_multitask_forward.1} parent=127 // pred_check_branch
          %870 = sbr.rel (%p868) target = $region136
        $region135: #{bert_multitask_forward.1} parent=127 // pred_region
          %872 = dma.done [#allocation5], 1024
        $region136: #{bert_multitask_forward.1} parent=127 // pred_fallthru
          _
        // Predicated region
        $region137: #{bert_multitask_forward.1} parent=127 // pred_check
          %p873 = pneg %p284
        $region138: #{bert_multitask_forward.1} parent=127 // pred_check_branch
          %875 = sbr.rel (%p873) target = $region140
        $region139: #{bert_multitask_forward.1} parent=127 // pred_region
          %877 = dma.done [#allocation5], 1024
        $region140: #{bert_multitask_forward.1} parent=127 // pred_fallthru
          _
        // Predicated region
        $region141: #{bert_multitask_forward.1} parent=127 // pred_check
          %p878 = pneg %p368
        $region142: #{bert_multitask_forward.1} parent=127 // pred_check_branch
          %880 = sbr.rel (%p878) target = $region144
        $region143: #{bert_multitask_forward.1} parent=127 // pred_region
          %882 = dma.done [#allocation8], 1024
        $region144: #{bert_multitask_forward.1} parent=127 // pred_fallthru
          _
        // Predicated region
        $region145: #{bert_multitask_forward.1} parent=127 // pred_check
          %p883 = pneg %p410
        $region146: #{bert_multitask_forward.1} parent=127 // pred_check_branch
          %885 = sbr.rel (%p883) target = $region148
        $region147: #{bert_multitask_forward.1} parent=127 // pred_region
          %887 = dma.done [#allocation8], 2048
        $region148: #{bert_multitask_forward.1} parent=127 // pred_fallthru
          _
        // Predicated region
        $region149: #{bert_multitask_forward.1} parent=127 // pred_check
          %p888 = pneg %p494
        $region150: #{bert_multitask_forward.1} parent=127 // pred_check_branch
          %890 = sbr.rel (%p888) target = $region152
        $region151: #{bert_multitask_forward.1} parent=127 // pred_region
          %892 = dma.done [#allocation11], 512
        $region152: #{bert_multitask_forward.1} parent=127 // pred_fallthru
          _
        // Predicated region
        $region153: #{bert_multitask_forward.1} parent=127 // pred_check
          %p893 = pneg %p578
        $region154: #{bert_multitask_forward.1} parent=127 // pred_check_branch
          %895 = sbr.rel (%p893) target = $region156
        $region155: #{bert_multitask_forward.1} parent=127 // pred_region
          %897 = dma.done [#allocation11], 512
        $region156: #{bert_multitask_forward.1} parent=127 // pred_fallthru
          _
        // Predicated region
        $region157: #{bert_multitask_forward.1} parent=127 // pred_check
          %p898 = pneg %p599
        $region158: #{bert_multitask_forward.1} parent=127 // pred_check_branch
          %900 = sbr.rel (%p898) target = $region160
        $region159: #{bert_multitask_forward.1} parent=127 // pred_region
          %902 = dma.done [#allocation14], 512
        $region160: #{bert_multitask_forward.1} parent=127 // pred_fallthru
          _
        // Predicated region
        $region161: #{bert_multitask_forward.1} parent=127 // pred_check
          %p903 = pneg %p620
        $region162: #{bert_multitask_forward.1} parent=127 // pred_check_branch
          %905 = sbr.rel (%p903) target = $region164
        $region163: #{bert_multitask_forward.1} parent=127 // pred_region
          %907 = dma.done [#allocation14], 512
        $region164: #{bert_multitask_forward.1} parent=127 // pred_fallthru
          _
        %p908 = scmp.lt.s32.totalorder %s43, 1
        %s909 = scalar_select %p908, %s43, 1
        %s910 = smul.addr %s909, 8
        %s911 = scalar_lea.vmem %s0, %s910
        %p912 = pneg %p64
        %p913 = pneg %p61
        %p914 = scmp.lt.s32.totalorder %s43, 1
        %s915 = scalar_select %p914, %s43, 1
        %s916 = smul.addr %s915, 8
        %s917 = scalar_lea.vmem %s1, %s916
        %p918 = pneg %p90
        %p919 = pneg %p87
        %p920 = scmp.lt.s32.totalorder %s43, 1
        %s921 = scalar_select %p920, %s43, 1
        %s922 = scalar_lea.vmem %s2, %s921
        %p923 = pneg %p116
        %p924 = pneg %p113
        %p925 = pneg %p137
        %p926 = pneg %p134
        %p927 = pneg %p158
        %p928 = pneg %p155
        %p929 = pneg %p179
        %p930 = pneg %p176
        %p931 = pneg %p200
        %p932 = pneg %p197
        %p933 = pneg %p221
        %p934 = pneg %p218
        %p935 = pneg %p242
        %p936 = pneg %p239
        %p937 = pneg %p263
        %p938 = pneg %p260
        %p939 = pneg %p284
        %p940 = pneg %p281
        %p941 = pneg %p305
        %p942 = pneg %p302
        %p943 = pneg %p326
        %p944 = pneg %p323
        %p945 = pneg %p347
        %p946 = pneg %p344
        %p947 = pneg %p368
        %p948 = pneg %p365
        %p949 = pneg %p389
        %p950 = pneg %p386
        %p951 = pneg %p410
        %p952 = pneg %p407
        %p953 = pneg %p431
        %p954 = pneg %p428
        %p955 = pneg %p452
        %p956 = pneg %p449
        %p957 = pneg %p473
        %p958 = pneg %p470
        %p959 = pneg %p494
        %p960 = pneg %p491
        %p961 = pneg %p515
        %p962 = pneg %p512
        %p963 = pneg %p536
        %p964 = pneg %p533
        %p965 = pneg %p557
        %p966 = pneg %p554
        %p967 = pneg %p578
        %p968 = pneg %p575
        %p969 = pneg %p599
        %p970 = pneg %p596
        %p971 = pneg %p620
        %p972 = pneg %p617
        %p973 = pneg %p646
        %p974 = pneg %p643
        %p975 = scmp.lt.s32.totalorder %s43, 1
        %s976 = scalar_select %p975, %s43, 1
        %s977 = smul.addr %s976, 2
        %s978 = smul.addr %s977, 8
        %s979 = scalar_lea.vmem %s27, %s978
        %p980 = scmp.lt.s32.totalorder %s43, 1
        %s981 = scalar_select %p980, %s43, 1
        %s982 = smul.addr %s981, 8
        %s983 = scalar_lea.vmem %s0, %s982
        %p984 = scmp.lt.s32.totalorder %s43, 1
        %s985 = scalar_select %p984, %s43, 1
        %s986 = smul.addr %s985, 8
        %s987 = scalar_lea.vmem %s1, %s986
        %p988 = scmp.lt.s32.totalorder %s43, 1
        %s989 = scalar_select %p988, %s43, 1
        %s990 = scalar_lea.vmem %s2, %s989
        %p991 = scmp.lt.s32.totalorder %s43, 1
        %s992 = scalar_select %p991, %s43, 1
        %s993 = smul.addr %s992, 2
        %s994 = smul.addr %s993, 8
        %s995 = scalar_lea.vmem %s27, %s994
        %v996 = vld [vmem:[%s983] sm:$0xff]
        %v997 = vlaneseq
        %v998 = vand.u32 %v997, 127
        %999 = vset.pattern.permute.xlu0 0
        %1000 = vperm.xlu0 %999, %v996
        %v1001 = vpop.permute.xlu0 %1000
        %vm1002 = vcmp.eq.s32.totalorder %v998, %v1001
        %v1003 = vsel %vm1002, 1, 0
        %v1004 = vcvt.s32.f32 %v1003
        %v1005 = vld [vmem:[#allocation2] sm:$0xff]
        %v1006 = vld [vmem:[#allocation2 + $0x8] sm:$0xff]
        %v1007 = vld [vmem:[#allocation2 + $0x10] sm:$0xff]
        %v1008 = vld [vmem:[#allocation2 + $0x18] sm:$0xff]
        %v1009 = vld [vmem:[#allocation2 + $0x20] sm:$0xff]
        %v1010 = vld [vmem:[#allocation2 + $0x28] sm:$0xff]
        %v1011 = vld [vmem:[#allocation2 + $0x30] sm:$0xff]
        %v1012 = vld [vmem:[#allocation2 + $0x38] sm:$0xff]
        %v1013 = vld [vmem:[#allocation2 + $0x40] sm:$0xff]
        %v1014 = vld [vmem:[#allocation2 + $0x48] sm:$0xff]
        %v1015 = vld [vmem:[#allocation2 + $0x50] sm:$0xff]
        %v1016 = vld [vmem:[#allocation2 + $0x58] sm:$0xff]
        %v1017 = vld [vmem:[#allocation2 + $0x60] sm:$0xf]
        %v1018 = vld [vmem:[%s4] sm:$0xff]
        %v1019 = vld [vmem:[%s987] sm:$0xff]
        %vm1020 = vcmp.eq.s32.totalorder %v1019, 0
        %v1021 = vld [vmem:[%s5] sm:$0x1]
        %v1022 = vld [vmem:[%s5 + $0x1] sm:$0x1]
        %v1023 = vsel %vm1020, 1, 0
        %1024 = vset.pattern.permute.xlu0 0
        %1025 = vperm.xlu0 %1024, %v1023
        %v1026 = vpop.permute.xlu0 %1025
        %vm1027 = vcmp.eq.s32.totalorder %v1026, 1
        %v1028 = vperm.slane %v1021, 0
        %v1029 = vperm.slane %v1022, 0
        %v1030 = vsel %vm1027, %v1028, %v1029
        %vm1031 = vcmask 818176
        %v1033 = vsel %vm1031, %v1004, 0
        %vm1035 = vcmask 1043456
        %v1037 = vsel %vm1035, %v1017, 0
        %1039 = vmatpush.msra.mxu0 0.0
        %1040 = vmatpush.msra.mxu0 0.0
        %1041 = vmatpush.msra.mxu0 0.0
        %1042 = vmatpush.msra.mxu0 %v1037
        %1043 = vmatpush.msra.mxu0 %v1016
        %1044 = vmatpush.msra.mxu0 %v1015
        %1045 = vmatpush.msra.mxu0 %v1014
        %1046 = vmatpush.msra.mxu0 %v1013
        %1047 = vmatpush.msra.mxu0 %v1012
        %1048 = vmatpush.msra.mxu0 %v1011
        %1049 = vmatpush.msra.mxu0 %v1010
        %1050 = vmatpush.msra.mxu0 %v1009
        %1051 = vmatpush.msra.mxu0 %v1008
        %1052 = vmatpush.msra.mxu0 %v1007
        %1053 = vmatpush.msra.mxu0 %v1006
        %1054 = vmatpush.msra.mxu0 %v1005
        %1055 = vmatmul.f32.gmra.mxu0 %v1033
        %v1056 = vpop.f32.mrf.mxu0
        %v1057 = vadd.f32 %v1018, %v1056
        %1058 = vdwg.mxu0
        %v1059 = vadd.f32 %v1057, %v1030
        %v1060 = vld [vmem:[%s6] sm:$0x1]
        %v1061 = vld [vmem:[%s7] sm:$0x1]
        %vm1062 = vcmask 261120
        %v1063 = vsel %vm1062, %v1059, 0.0
        %1064 = vadd.xlane.f32.xlu0 %v1063
        %v1065 = vpop.xlane.xlu0 %1064
        %v1066 = vrcp.pop 32.0
        %v1067 = vmul.f32 32.0, %v1066
        %v1068 = vsub.f32 1.0, %v1067
        %v1069 = vmul.f32 %v1066, %v1068
        %v1070 = vadd.f32 %v1066, %v1069
        %vm1071 = vweird.f32 %v1066
        %v1072 = vsel %vm1071, %v1066, %v1070
        %v1073 = vmul.f32 %v1065, %v1072
        %v1074 = vsub.f32 %v1059, %v1073
        %v1075 = vmul.f32 %v1074, %v1074
        %v1076 = vsel %vm1062, %v1075, 0.0
        %1077 = vadd.xlane.f32.xlu0 %v1076
        %v1078 = vpop.xlane.xlu0 %1077
        %v1079 = vmul.f32 %v1078, %v1072
        %v1080 = vadd.f32 %v1079, 1e-12
        %v1081 = vrsqrt.pop %v1080
        %v1082 = vmul.f32 %v1081, %v1080
        %v1083 = vmul.f32 %v1082, %v1081
        %v1084 = vmul.f32 0.5, %v1083
        %v1085 = vsub.f32 1.5, %v1084
        %v1086 = vmul.f32 %v1081, %v1085
        %vm1087 = vweird.f32 %v1080
        %vm1088 = vweird.f32 %v1081
        %vm1089 = vmor %vm1087, %vm1088
        %v1090 = vsel %vm1089, %v1081, %v1086
        %v1091 = vmul.f32 %v1074, %v1090
        %v1093 = vperm.slane %v1060, 0
        %v1095 = vmul.f32 %v1091, %v1093
        %v1097 = vperm.slane %v1061, 0
        %v1099 = vadd.f32 %v1095, %v1097
        %v1100 = vld [vmem:[%s990] sm:$0x1]
        %v1101 = vcvt.s32.f32 %v1100
        %v1102 = vsub.f32 1.0, %v1101
        %v1103 = vmul.f32 %v1102, -10000.0
        %v1105 = vperm.slane %v1103, 0
        %1106 = vrot.lane.b32.xlu0 %v1105, 8
        %v1107 = vpop.permute.xlu0 %1106
        %1109 = vrot.lane.b32.xlu0 %v1105, 16
        %v1110 = vpop.permute.xlu0 %1109
        %1112 = vrot.lane.b32.xlu0 %v1105, 24
        %v1113 = vpop.permute.xlu0 %1112
        %vm1115 = vcmask 64512
        %v1116 = vsel %vm1115, %v1103, %v1107
        %vm1117 = vcmask 130048
        %v1118 = vsel %vm1117, %v1116, %v1110
        %vm1119 = vcmask 195584
        %v1120 = vsel %vm1119, %v1118, %v1113
        %v1121 = vld [vmem:[#allocation12] sm:$0xff]
        %v1122 = vld [vmem:[#allocation12 + $0x8] sm:$0xff]
        %v1123 = vld [vmem:[#allocation12 + $0x10] sm:$0xff]
        %v1124 = vld [vmem:[#allocation12 + $0x18] sm:$0xff]
        %v1125 = vld [vmem:[#allocation13] sm:$0xff]
        %v1126 = vld [vmem:[#allocation13 + $0x8] sm:$0xff]
        %v1127 = vld [vmem:[#allocation13 + $0x10] sm:$0xff]
        %v1128 = vld [vmem:[#allocation13 + $0x18] sm:$0xff]
        %v1129 = vld [vmem:[#allocation15] sm:$0xff]
        %v1130 = vld [vmem:[#allocation15 + $0x8] sm:$0xff]
        %v1131 = vld [vmem:[#allocation15 + $0x10] sm:$0xff]
        %v1132 = vld [vmem:[#allocation15 + $0x18] sm:$0xff]
        %v1133 = vld [vmem:[#allocation4] sm:$0xff]
        %v1134 = vld [vmem:[#allocation4 + $0x8] sm:$0xff]
        %v1135 = vld [vmem:[#allocation4 + $0x10] sm:$0xff]
        %v1136 = vld [vmem:[#allocation4 + $0x18] sm:$0xff]
        %v1137 = vld [vmem:[%s9] sm:$0x1]
        %v1139 = vperm.slane %v1137, 0
        %v1142 = vsel %vm1062, %v1099, 0
        %1144 = vmatpush.msra.mxu0 0.0
        %1145 = vmatpush.msra.mxu0 0.0
        %1146 = vmatpush.msra.mxu0 0.0
        %1147 = vmatpush.msra.mxu0 0.0
        %1148 = vmatpush.msra.mxu0 0.0
        %1149 = vmatpush.msra.mxu0 0.0
        %1150 = vmatpush.msra.mxu0 0.0
        %1151 = vmatpush.msra.mxu0 0.0
        %1152 = vmatpush.msra.mxu0 0.0
        %1153 = vmatpush.msra.mxu0 0.0
        %1154 = vmatpush.msra.mxu0 0.0
        %1155 = vmatpush.msra.mxu0 0.0
        %1156 = vmatpush.msra.mxu0 %v1136
        %1157 = vmatpush.msra.mxu0 %v1135
        %1158 = vmatpush.msra.mxu0 %v1134
        %1159 = vmatpush.msra.mxu0 %v1133
        %1160 = vmatmul.f32.gmra.mxu0 %v1142
        %v1161 = vpop.f32.mrf.mxu0
        %v1162 = vadd.f32 %v1139, %v1161
        %1163 = vdwg.mxu0
        %1165 = vrot.lane.b32.xlu0 %v1162, 96
        %v1166 = vpop.permute.xlu0 %1165
        %1168 = vxpose.xlu0.b32.start [1/16] %v1166, 128
        %1169 = vxpose.xlu0.b32.cont [2/16] 0.0, 128
        %1170 = vxpose.xlu0.b32.cont [3/16] 0.0, 128
        %1171 = vxpose.xlu0.b32.cont [4/16] 0.0, 128
        %1172 = vxpose.xlu0.b32.cont [5/16] 0.0, 128
        %1173 = vxpose.xlu0.b32.cont [6/16] 0.0, 128
        %1174 = vxpose.xlu0.b32.cont [7/16] 0.0, 128
        %1175 = vxpose.xlu0.b32.cont [8/16] 0.0, 128
        %1176 = vxpose.xlu0.b32.cont [9/16] 0.0, 128
        %1177 = vxpose.xlu0.b32.cont [10/16] 0.0, 128
        %1178 = vxpose.xlu0.b32.cont [11/16] 0.0, 128
        %1179 = vxpose.xlu0.b32.cont [12/16] 0.0, 128
        %1180 = vxpose.xlu0.b32.cont [13/16] 0.0, 128
        %1181 = vxpose.xlu0.b32.cont [14/16] 0.0, 128
        %1182 = vxpose.xlu0.b32.cont [15/16] 0.0, 128
        %1183 = vxpose.xlu0.b32.end [16/16] 0.0, 128
        %v1184 = vpop.trf.xlu0
        %v1185 = vpop.trf.xlu0
        %v1186 = vpop.trf.xlu0
        %v1187 = vpop.trf.xlu0
        %v1188 = vpop.trf.xlu0
        %v1189 = vpop.trf.xlu0
        %v1190 = vpop.trf.xlu0
        %v1191 = vpop.trf.xlu0
        %v1192 = vpop.trf.xlu0
        %v1193 = vpop.trf.xlu0
        %v1194 = vpop.trf.xlu0
        %v1195 = vpop.trf.xlu0
        %v1196 = vpop.trf.xlu0
        %v1197 = vpop.trf.xlu0
        %v1198 = vpop.trf.xlu0
        %v1199 = vpop.trf.xlu0
        %1204 = vrot.lane.b32.xlu0 %v1184, 8
        %v1205 = vpop.permute.xlu0 %1204
        %1206 = vrot.lane.b32.xlu0 %v1185, 8
        %v1207 = vpop.permute.xlu0 %1206
        %1208 = vrot.lane.b32.xlu0 %v1186, 8
        %v1209 = vpop.permute.xlu0 %1208
        %1210 = vrot.lane.b32.xlu0 %v1187, 8
        %v1211 = vpop.permute.xlu0 %1210
        %1216 = vrot.lane.b32.xlu0 %v1184, 16
        %v1217 = vpop.permute.xlu0 %1216
        %1218 = vrot.lane.b32.xlu0 %v1185, 16
        %v1219 = vpop.permute.xlu0 %1218
        %1220 = vrot.lane.b32.xlu0 %v1186, 16
        %v1221 = vpop.permute.xlu0 %1220
        %1222 = vrot.lane.b32.xlu0 %v1187, 16
        %v1223 = vpop.permute.xlu0 %1222
        %1228 = vrot.lane.b32.xlu0 %v1184, 24
        %v1229 = vpop.permute.xlu0 %1228
        %1230 = vrot.lane.b32.xlu0 %v1185, 24
        %v1231 = vpop.permute.xlu0 %1230
        %1232 = vrot.lane.b32.xlu0 %v1186, 24
        %v1233 = vpop.permute.xlu0 %1232
        %1234 = vrot.lane.b32.xlu0 %v1187, 24
        %v1235 = vpop.permute.xlu0 %1234
        %v1240 = vsel %vm1115, %v1184, %v1205
        %v1241 = vsel %vm1115, %v1185, %v1207
        %v1242 = vsel %vm1115, %v1186, %v1209
        %v1243 = vsel %vm1115, %v1187, %v1211
        %v1244 = vsel %vm1117, %v1240, %v1217
        %v1245 = vsel %vm1117, %v1241, %v1219
        %v1246 = vsel %vm1117, %v1242, %v1221
        %v1247 = vsel %vm1117, %v1243, %v1223
        %v1248 = vsel %vm1119, %v1244, %v1229
        %v1249 = vsel %vm1119, %v1245, %v1231
        %v1250 = vsel %vm1119, %v1246, %v1233
        %v1251 = vsel %vm1119, %v1247, %v1235
        %v1252 = vmul.f32 %v1248, %v1121
        %v1253 = vmul.f32 %v1249, %v1122
        %v1254 = vmul.f32 %v1250, %v1123
        %v1255 = vmul.f32 %v1251, %v1124
        %v1256 = vperm.slane %v1120, 0
        %v1257 = vsel %vm1062, %v1162, 0
        %1259 = vmatpush.msra.mxu0 0.0
        %1260 = vmatpush.msra.mxu0 0.0
        %1261 = vmatpush.msra.mxu0 0.0
        %1262 = vmatpush.msra.mxu0 0.0
        %1263 = vmatpush.msra.mxu0 0.0
        %1264 = vmatpush.msra.mxu0 0.0
        %1265 = vmatpush.msra.mxu0 0.0
        %1266 = vmatpush.msra.mxu0 0.0
        %1267 = vmatpush.msra.mxu0 0.0
        %1268 = vmatpush.msra.mxu0 0.0
        %1269 = vmatpush.msra.mxu0 0.0
        %1270 = vmatpush.msra.mxu0 0.0
        %1271 = vmatpush.msra.mxu0 %v1255
        %1272 = vmatpush.msra.mxu0 %v1254
        %1273 = vmatpush.msra.mxu0 %v1253
        %1274 = vmatpush.msra.mxu0 %v1252
        %1275 = vmatmul.f32.gmra.mxu0 %v1257
        %v1276 = vpop.f32.mrf.mxu0
        %v1277 = vadd.f32 %v1256, %v1276
        %1278 = vdwg.mxu0
        %v1279 = vsel %vm1062, %v1277, -inf
        %1280 = vmax.xlane.f32.xlu0 %v1279
        %v1281 = vpop.xlane.xlu0 %1280
        %v1282 = vsub.f32 %v1277, %v1281
        %v1283 = vmul.f32 %v1282, 1.442695
        %v1284 = vpow.pop %v1283
        %v1286 = vsel %vm1062, %v1284, 0
        %1288 = vmatpush.msra.mxu0 0.0
        %1289 = vmatpush.msra.mxu0 0.0
        %1290 = vmatpush.msra.mxu0 0.0
        %1291 = vmatpush.msra.mxu0 0.0
        %1292 = vmatpush.msra.mxu0 0.0
        %1293 = vmatpush.msra.mxu0 0.0
        %1294 = vmatpush.msra.mxu0 0.0
        %1295 = vmatpush.msra.mxu0 0.0
        %1296 = vmatpush.msra.mxu0 0.0
        %1297 = vmatpush.msra.mxu0 0.0
        %1298 = vmatpush.msra.mxu0 0.0
        %1299 = vmatpush.msra.mxu0 0.0
        %1300 = vmatpush.msra.mxu0 %v1132
        %1301 = vmatpush.msra.mxu0 %v1131
        %1302 = vmatpush.msra.mxu0 %v1130
        %1303 = vmatpush.msra.mxu0 %v1129
        %1304 = vmatmul.f32.gmra.mxu0 %v1286
        %v1305 = vpop.f32.mrf.mxu0
        %v1306 = vadd.f32 0.0, %v1305
        %1307 = vdwg.mxu0
        %v1308 = vrcp.pop %v1306
        %v1309 = vmul.f32 %v1284, %v1308
        %1314 = vrot.lane.b32.xlu0 %v1125, 64
        %v1315 = vpop.permute.xlu0 %1314
        %1316 = vrot.lane.b32.xlu0 %v1126, 64
        %v1317 = vpop.permute.xlu0 %1316
        %1318 = vrot.lane.b32.xlu0 %v1127, 64
        %v1319 = vpop.permute.xlu0 %1318
        %1320 = vrot.lane.b32.xlu0 %v1128, 64
        %v1321 = vpop.permute.xlu0 %1320
        %v1326 = vmul.f32 %v1162, %v1315
        %v1327 = vmul.f32 %v1162, %v1317
        %v1328 = vmul.f32 %v1162, %v1319
        %v1329 = vmul.f32 %v1162, %v1321
        %1334 = vrot.lane.b32.xlu0 %v1326, 64
        %v1335 = vpop.permute.xlu0 %1334
        %1336 = vrot.lane.b32.xlu0 %v1327, 64
        %v1337 = vpop.permute.xlu0 %1336
        %1338 = vrot.lane.b32.xlu0 %v1328, 64
        %v1339 = vpop.permute.xlu0 %1338
        %1340 = vrot.lane.b32.xlu0 %v1329, 64
        %v1341 = vpop.permute.xlu0 %1340
        %v1347 = vsel %vm1062, %v1309, 0
        %1349 = vmatpush.msra.mxu0 0.0
        %1350 = vmatpush.msra.mxu0 0.0
        %1351 = vmatpush.msra.mxu0 0.0
        %1352 = vmatpush.msra.mxu0 0.0
        %1353 = vmatpush.msra.mxu0 0.0
        %1354 = vmatpush.msra.mxu0 0.0
        %1355 = vmatpush.msra.mxu0 0.0
        %1356 = vmatpush.msra.mxu0 0.0
        %1357 = vmatpush.msra.mxu0 0.0
        %1358 = vmatpush.msra.mxu0 0.0
        %1359 = vmatpush.msra.mxu0 0.0
        %1360 = vmatpush.msra.mxu0 0.0
        %1361 = vmatpush.msra.mxu0 %v1341
        %1362 = vmatpush.msra.mxu0 %v1339
        %1363 = vmatpush.msra.mxu0 %v1337
        %1364 = vmatpush.msra.mxu0 %v1335
        %1365 = vmatmul.f32.gmra.mxu0 %v1347
        %v1366 = vpop.f32.mrf.mxu0
        %v1367 = vadd.f32 0.0, %v1366
        %1368 = vdwg.mxu0
        %v1369 = vld [vmem:[#allocation6] sm:$0xff]
        %v1370 = vld [vmem:[#allocation6 + $0x8] sm:$0xff]
        %v1371 = vld [vmem:[#allocation6 + $0x10] sm:$0xff]
        %v1372 = vld [vmem:[#allocation6 + $0x18] sm:$0xff]
        %v1373 = vld [vmem:[%s11] sm:$0x1]
        %v1375 = vperm.slane %v1373, 0
        %v1378 = vsel %vm1062, %v1367, 0
        %1380 = vmatpush.msra.mxu0 0.0
        %1381 = vmatpush.msra.mxu0 0.0
        %1382 = vmatpush.msra.mxu0 0.0
        %1383 = vmatpush.msra.mxu0 0.0
        %1384 = vmatpush.msra.mxu0 0.0
        %1385 = vmatpush.msra.mxu0 0.0
        %1386 = vmatpush.msra.mxu0 0.0
        %1387 = vmatpush.msra.mxu0 0.0
        %1388 = vmatpush.msra.mxu0 0.0
        %1389 = vmatpush.msra.mxu0 0.0
        %1390 = vmatpush.msra.mxu0 0.0
        %1391 = vmatpush.msra.mxu0 0.0
        %1392 = vmatpush.msra.mxu0 %v1372
        %1393 = vmatpush.msra.mxu0 %v1371
        %1394 = vmatpush.msra.mxu0 %v1370
        %1395 = vmatpush.msra.mxu0 %v1369
        %1396 = vmatmul.f32.gmra.mxu0 %v1378
        %v1397 = vpop.f32.mrf.mxu0
        %v1398 = vadd.f32 %v1375, %v1397
        %1399 = vdwg.mxu0
        %v1400 = vadd.f32 %v1099, %v1398
        %v1401 = vld [vmem:[%s12] sm:$0x1]
        %v1402 = vld [vmem:[%s13] sm:$0x1]
        %v1403 = vsel %vm1062, %v1400, 0.0
        %1404 = vadd.xlane.f32.xlu0 %v1403
        %v1405 = vpop.xlane.xlu0 %1404
        %v1406 = vmul.f32 %v1405, %v1072
        %v1407 = vsub.f32 %v1400, %v1406
        %v1408 = vmul.f32 %v1407, %v1407
        %v1409 = vsel %vm1062, %v1408, 0.0
        %1410 = vadd.xlane.f32.xlu0 %v1409
        %v1411 = vpop.xlane.xlu0 %1410
        %v1412 = vmul.f32 %v1411, %v1072
        %v1413 = vadd.f32 %v1412, 1e-12
        %v1414 = vrsqrt.pop %v1413
        %v1415 = vmul.f32 %v1414, %v1413
        %v1416 = vmul.f32 %v1415, %v1414
        %v1417 = vmul.f32 0.5, %v1416
        %v1418 = vsub.f32 1.5, %v1417
        %v1419 = vmul.f32 %v1414, %v1418
        %vm1420 = vweird.f32 %v1413
        %vm1421 = vweird.f32 %v1414
        %vm1422 = vmor %vm1420, %vm1421
        %v1423 = vsel %vm1422, %v1414, %v1419
        %v1424 = vmul.f32 %v1407, %v1423
        %v1426 = vperm.slane %v1401, 0
        %v1428 = vmul.f32 %v1424, %v1426
        %v1430 = vperm.slane %v1402, 0
        %v1432 = vadd.f32 %v1428, %v1430
        %v1433 = vld [vmem:[#allocation7] sm:$0xff]
        %v1434 = vld [vmem:[#allocation7 + $0x8] sm:$0xff]
        %v1435 = vld [vmem:[#allocation7 + $0x10] sm:$0xff]
        %v1436 = vld [vmem:[#allocation7 + $0x18] sm:$0xff]
        %v1437 = vld [vmem:[%s15] sm:$0x1]
        %v1439 = vperm.slane %v1437, 0
        %v1442 = vsel %vm1062, %v1432, 0
        %1444 = vmatpush.msra.mxu0 0.0
        %1445 = vmatpush.msra.mxu0 0.0
        %1446 = vmatpush.msra.mxu0 0.0
        %1447 = vmatpush.msra.mxu0 0.0
        %1448 = vmatpush.msra.mxu0 0.0
        %1449 = vmatpush.msra.mxu0 0.0
        %1450 = vmatpush.msra.mxu0 0.0
        %1451 = vmatpush.msra.mxu0 0.0
        %1452 = vmatpush.msra.mxu0 0.0
        %1453 = vmatpush.msra.mxu0 0.0
        %1454 = vmatpush.msra.mxu0 0.0
        %1455 = vmatpush.msra.mxu0 0.0
        %1456 = vmatpush.msra.mxu0 %v1436
        %1457 = vmatpush.msra.mxu0 %v1435
        %1458 = vmatpush.msra.mxu0 %v1434
        %1459 = vmatpush.msra.mxu0 %v1433
        %1460 = vmatmul.f32.gmra.mxu0 %v1442
        %v1461 = vpop.f32.mrf.mxu0
        %v1462 = vadd.f32 %v1439, %v1461
        %1463 = vdwg.mxu0
        %v1464 = vmul.f32 %v1462, 0.5
        %v1465 = vmul.f32 %v1462, 0.044715
        %v1466 = vmul.f32 %v1465, %v1462
        %v1467 = vmul.f32 %v1466, %v1462
        %v1468 = vadd.f32 %v1462, %v1467
        %v1469 = vmul.f32 %v1468, 0.7978846
        %v1470 = vtanh.pop %v1469
        %v1471 = vadd.f32 %v1470, 1.0
        %v1472 = vmul.f32 %v1464, %v1471
        %v1473 = vld [vmem:[#allocation9] sm:$0xff]
        %v1474 = vld [vmem:[#allocation9 + $0x8] sm:$0xff]
        %v1475 = vld [vmem:[#allocation9 + $0x10] sm:$0xff]
        %v1476 = vld [vmem:[#allocation9 + $0x18] sm:$0xff]
        %v1477 = vld [vmem:[#allocation9 + $0x20] sm:$0xff]
        %v1478 = vld [vmem:[#allocation9 + $0x28] sm:$0xff]
        %v1479 = vld [vmem:[#allocation9 + $0x30] sm:$0xff]
        %v1480 = vld [vmem:[#allocation9 + $0x38] sm:$0xff]
        %v1481 = vld [vmem:[%s17] sm:$0x1]
        %v1483 = vperm.slane %v1481, 0
        %vm1485 = vcmask 523264
        %v1487 = vsel %vm1485, %v1472, 0
        %1489 = vmatpush.msra.mxu0 0.0
        %1490 = vmatpush.msra.mxu0 0.0
        %1491 = vmatpush.msra.mxu0 0.0
        %1492 = vmatpush.msra.mxu0 0.0
        %1493 = vmatpush.msra.mxu0 0.0
        %1494 = vmatpush.msra.mxu0 0.0
        %1495 = vmatpush.msra.mxu0 0.0
        %1496 = vmatpush.msra.mxu0 0.0
        %1497 = vmatpush.msra.mxu0 %v1480
        %1498 = vmatpush.msra.mxu0 %v1479
        %1499 = vmatpush.msra.mxu0 %v1478
        %1500 = vmatpush.msra.mxu0 %v1477
        %1501 = vmatpush.msra.mxu0 %v1476
        %1502 = vmatpush.msra.mxu0 %v1475
        %1503 = vmatpush.msra.mxu0 %v1474
        %1504 = vmatpush.msra.mxu0 %v1473
        %1505 = vmatmul.f32.gmra.mxu0 %v1487
        %v1506 = vpop.f32.mrf.mxu0
        %v1507 = vadd.f32 %v1483, %v1506
        %1508 = vdwg.mxu0
        %v1509 = vadd.f32 %v1432, %v1507
        %v1510 = vld [vmem:[%s18] sm:$0x1]
        %v1511 = vld [vmem:[%s19] sm:$0x1]
        %v1512 = vsel %vm1062, %v1509, 0.0
        %1513 = vadd.xlane.f32.xlu0 %v1512
        %v1514 = vpop.xlane.xlu0 %1513
        %v1515 = vmul.f32 %v1514, %v1072
        %v1516 = vsub.f32 %v1509, %v1515
        %v1517 = vmul.f32 %v1516, %v1516
        %v1518 = vsel %vm1062, %v1517, 0.0
        %1519 = vadd.xlane.f32.xlu0 %v1518
        %v1520 = vpop.xlane.xlu0 %1519
        %v1521 = vmul.f32 %v1520, %v1072
        %v1522 = vadd.f32 %v1521, 1e-12
        %v1523 = vrsqrt.pop %v1522
        %v1524 = vmul.f32 %v1523, %v1522
        %v1525 = vmul.f32 %v1524, %v1523
        %v1526 = vmul.f32 0.5, %v1525
        %v1527 = vsub.f32 1.5, %v1526
        %v1528 = vmul.f32 %v1523, %v1527
        %vm1529 = vweird.f32 %v1522
        %vm1530 = vweird.f32 %v1523
        %vm1531 = vmor %vm1529, %vm1530
        %v1532 = vsel %vm1531, %v1523, %v1528
        %v1533 = vmul.f32 %v1516, %v1532
        %v1535 = vperm.slane %v1510, 0
        %v1537 = vmul.f32 %v1533, %v1535
        %v1539 = vperm.slane %v1511, 0
        %v1541 = vadd.f32 %v1537, %v1539
        %s1542 = scalar_lea.vmem [#allocation4], 32
        %v1543 = vld [vmem:[%s1542] sm:$0xff]
        %v1544 = vld [vmem:[%s1542 + $0x8] sm:$0xff]
        %v1545 = vld [vmem:[%s1542 + $0x10] sm:$0xff]
        %v1546 = vld [vmem:[%s1542 + $0x18] sm:$0xff]
        %s1547 = scalar_lea.vmem %s9, 1
        %v1548 = vld [vmem:[%s1547] sm:$0x1]
        %v1550 = vperm.slane %v1548, 0
        %v1553 = vsel %vm1062, %v1541, 0
        %1555 = vmatpush.msra.mxu0 0.0
        %1556 = vmatpush.msra.mxu0 0.0
        %1557 = vmatpush.msra.mxu0 0.0
        %1558 = vmatpush.msra.mxu0 0.0
        %1559 = vmatpush.msra.mxu0 0.0
        %1560 = vmatpush.msra.mxu0 0.0
        %1561 = vmatpush.msra.mxu0 0.0
        %1562 = vmatpush.msra.mxu0 0.0
        %1563 = vmatpush.msra.mxu0 0.0
        %1564 = vmatpush.msra.mxu0 0.0
        %1565 = vmatpush.msra.mxu0 0.0
        %1566 = vmatpush.msra.mxu0 0.0
        %1567 = vmatpush.msra.mxu0 %v1546
        %1568 = vmatpush.msra.mxu0 %v1545
        %1569 = vmatpush.msra.mxu0 %v1544
        %1570 = vmatpush.msra.mxu0 %v1543
        %1571 = vmatmul.f32.gmra.mxu0 %v1553
        %v1572 = vpop.f32.mrf.mxu0
        %v1573 = vadd.f32 %v1550, %v1572
        %1574 = vdwg.mxu0
        %1576 = vrot.lane.b32.xlu0 %v1573, 96
        %v1577 = vpop.permute.xlu0 %1576
        %1579 = vxpose.xlu0.b32.start [1/16] %v1577, 128
        %1580 = vxpose.xlu0.b32.cont [2/16] 0.0, 128
        %1581 = vxpose.xlu0.b32.cont [3/16] 0.0, 128
        %1582 = vxpose.xlu0.b32.cont [4/16] 0.0, 128
        %1583 = vxpose.xlu0.b32.cont [5/16] 0.0, 128
        %1584 = vxpose.xlu0.b32.cont [6/16] 0.0, 128
        %1585 = vxpose.xlu0.b32.cont [7/16] 0.0, 128
        %1586 = vxpose.xlu0.b32.cont [8/16] 0.0, 128
        %1587 = vxpose.xlu0.b32.cont [9/16] 0.0, 128
        %1588 = vxpose.xlu0.b32.cont [10/16] 0.0, 128
        %1589 = vxpose.xlu0.b32.cont [11/16] 0.0, 128
        %1590 = vxpose.xlu0.b32.cont [12/16] 0.0, 128
        %1591 = vxpose.xlu0.b32.cont [13/16] 0.0, 128
        %1592 = vxpose.xlu0.b32.cont [14/16] 0.0, 128
        %1593 = vxpose.xlu0.b32.cont [15/16] 0.0, 128
        %1594 = vxpose.xlu0.b32.end [16/16] 0.0, 128
        %v1595 = vpop.trf.xlu0
        %v1596 = vpop.trf.xlu0
        %v1597 = vpop.trf.xlu0
        %v1598 = vpop.trf.xlu0
        %v1599 = vpop.trf.xlu0
        %v1600 = vpop.trf.xlu0
        %v1601 = vpop.trf.xlu0
        %v1602 = vpop.trf.xlu0
        %v1603 = vpop.trf.xlu0
        %v1604 = vpop.trf.xlu0
        %v1605 = vpop.trf.xlu0
        %v1606 = vpop.trf.xlu0
        %v1607 = vpop.trf.xlu0
        %v1608 = vpop.trf.xlu0
        %v1609 = vpop.trf.xlu0
        %v1610 = vpop.trf.xlu0
        %1615 = vrot.lane.b32.xlu0 %v1595, 8
        %v1616 = vpop.permute.xlu0 %1615
        %1617 = vrot.lane.b32.xlu0 %v1596, 8
        %v1618 = vpop.permute.xlu0 %1617
        %1619 = vrot.lane.b32.xlu0 %v1597, 8
        %v1620 = vpop.permute.xlu0 %1619
        %1621 = vrot.lane.b32.xlu0 %v1598, 8
        %v1622 = vpop.permute.xlu0 %1621
        %1627 = vrot.lane.b32.xlu0 %v1595, 16
        %v1628 = vpop.permute.xlu0 %1627
        %1629 = vrot.lane.b32.xlu0 %v1596, 16
        %v1630 = vpop.permute.xlu0 %1629
        %1631 = vrot.lane.b32.xlu0 %v1597, 16
        %v1632 = vpop.permute.xlu0 %1631
        %1633 = vrot.lane.b32.xlu0 %v1598, 16
        %v1634 = vpop.permute.xlu0 %1633
        %1639 = vrot.lane.b32.xlu0 %v1595, 24
        %v1640 = vpop.permute.xlu0 %1639
        %1641 = vrot.lane.b32.xlu0 %v1596, 24
        %v1642 = vpop.permute.xlu0 %1641
        %1643 = vrot.lane.b32.xlu0 %v1597, 24
        %v1644 = vpop.permute.xlu0 %1643
        %1645 = vrot.lane.b32.xlu0 %v1598, 24
        %v1646 = vpop.permute.xlu0 %1645
        %v1651 = vsel %vm1115, %v1595, %v1616
        %v1652 = vsel %vm1115, %v1596, %v1618
        %v1653 = vsel %vm1115, %v1597, %v1620
        %v1654 = vsel %vm1115, %v1598, %v1622
        %v1655 = vsel %vm1117, %v1651, %v1628
        %v1656 = vsel %vm1117, %v1652, %v1630
        %v1657 = vsel %vm1117, %v1653, %v1632
        %v1658 = vsel %vm1117, %v1654, %v1634
        %v1659 = vsel %vm1119, %v1655, %v1640
        %v1660 = vsel %vm1119, %v1656, %v1642
        %v1661 = vsel %vm1119, %v1657, %v1644
        %v1662 = vsel %vm1119, %v1658, %v1646
        %v1663 = vmul.f32 %v1659, %v1121
        %v1664 = vmul.f32 %v1660, %v1122
        %v1665 = vmul.f32 %v1661, %v1123
        %v1666 = vmul.f32 %v1662, %v1124
        %v1667 = vsel %vm1062, %v1573, 0
        %1669 = vmatpush.msra.mxu0 0.0
        %1670 = vmatpush.msra.mxu0 0.0
        %1671 = vmatpush.msra.mxu0 0.0
        %1672 = vmatpush.msra.mxu0 0.0
        %1673 = vmatpush.msra.mxu0 0.0
        %1674 = vmatpush.msra.mxu0 0.0
        %1675 = vmatpush.msra.mxu0 0.0
        %1676 = vmatpush.msra.mxu0 0.0
        %1677 = vmatpush.msra.mxu0 0.0
        %1678 = vmatpush.msra.mxu0 0.0
        %1679 = vmatpush.msra.mxu0 0.0
        %1680 = vmatpush.msra.mxu0 0.0
        %1681 = vmatpush.msra.mxu0 %v1666
        %1682 = vmatpush.msra.mxu0 %v1665
        %1683 = vmatpush.msra.mxu0 %v1664
        %1684 = vmatpush.msra.mxu0 %v1663
        %1685 = vmatmul.f32.gmra.mxu0 %v1667
        %v1686 = vpop.f32.mrf.mxu0
        %v1687 = vadd.f32 %v1256, %v1686
        %1688 = vdwg.mxu0
        %v1689 = vsel %vm1062, %v1687, -inf
        %1690 = vmax.xlane.f32.xlu0 %v1689
        %v1691 = vpop.xlane.xlu0 %1690
        %v1692 = vsub.f32 %v1687, %v1691
        %v1693 = vmul.f32 %v1692, 1.442695
        %v1694 = vpow.pop %v1693
        %v1696 = vsel %vm1062, %v1694, 0
        %1698 = vmatpush.msra.mxu0 0.0
        %1699 = vmatpush.msra.mxu0 0.0
        %1700 = vmatpush.msra.mxu0 0.0
        %1701 = vmatpush.msra.mxu0 0.0
        %1702 = vmatpush.msra.mxu0 0.0
        %1703 = vmatpush.msra.mxu0 0.0
        %1704 = vmatpush.msra.mxu0 0.0
        %1705 = vmatpush.msra.mxu0 0.0
        %1706 = vmatpush.msra.mxu0 0.0
        %1707 = vmatpush.msra.mxu0 0.0
        %1708 = vmatpush.msra.mxu0 0.0
        %1709 = vmatpush.msra.mxu0 0.0
        %1710 = vmatpush.msra.mxu0 %v1132
        %1711 = vmatpush.msra.mxu0 %v1131
        %1712 = vmatpush.msra.mxu0 %v1130
        %1713 = vmatpush.msra.mxu0 %v1129
        %1714 = vmatmul.f32.gmra.mxu0 %v1696
        %v1715 = vpop.f32.mrf.mxu0
        %v1716 = vadd.f32 0.0, %v1715
        %1717 = vdwg.mxu0
        %v1718 = vrcp.pop %v1716
        %v1719 = vmul.f32 %v1694, %v1718
        %v1720 = vmul.f32 %v1573, %v1315
        %v1721 = vmul.f32 %v1573, %v1317
        %v1722 = vmul.f32 %v1573, %v1319
        %v1723 = vmul.f32 %v1573, %v1321
        %1728 = vrot.lane.b32.xlu0 %v1720, 64
        %v1729 = vpop.permute.xlu0 %1728
        %1730 = vrot.lane.b32.xlu0 %v1721, 64
        %v1731 = vpop.permute.xlu0 %1730
        %1732 = vrot.lane.b32.xlu0 %v1722, 64
        %v1733 = vpop.permute.xlu0 %1732
        %1734 = vrot.lane.b32.xlu0 %v1723, 64
        %v1735 = vpop.permute.xlu0 %1734
        %v1741 = vsel %vm1062, %v1719, 0
        %1743 = vmatpush.msra.mxu0 0.0
        %1744 = vmatpush.msra.mxu0 0.0
        %1745 = vmatpush.msra.mxu0 0.0
        %1746 = vmatpush.msra.mxu0 0.0
        %1747 = vmatpush.msra.mxu0 0.0
        %1748 = vmatpush.msra.mxu0 0.0
        %1749 = vmatpush.msra.mxu0 0.0
        %1750 = vmatpush.msra.mxu0 0.0
        %1751 = vmatpush.msra.mxu0 0.0
        %1752 = vmatpush.msra.mxu0 0.0
        %1753 = vmatpush.msra.mxu0 0.0
        %1754 = vmatpush.msra.mxu0 0.0
        %1755 = vmatpush.msra.mxu0 %v1735
        %1756 = vmatpush.msra.mxu0 %v1733
        %1757 = vmatpush.msra.mxu0 %v1731
        %1758 = vmatpush.msra.mxu0 %v1729
        %1759 = vmatmul.f32.gmra.mxu0 %v1741
        %v1760 = vpop.f32.mrf.mxu0
        %v1761 = vadd.f32 0.0, %v1760
        %1762 = vdwg.mxu0
        %s1763 = scalar_lea.vmem [#allocation6], 32
        %v1764 = vld [vmem:[%s1763] sm:$0xff]
        %v1765 = vld [vmem:[%s1763 + $0x8] sm:$0xff]
        %v1766 = vld [vmem:[%s1763 + $0x10] sm:$0xff]
        %v1767 = vld [vmem:[%s1763 + $0x18] sm:$0xff]
        %s1768 = scalar_lea.vmem %s11, 1
        %v1769 = vld [vmem:[%s1768] sm:$0x1]
        %v1771 = vperm.slane %v1769, 0
        %v1774 = vsel %vm1062, %v1761, 0
        %1776 = vmatpush.msra.mxu0 0.0
        %1777 = vmatpush.msra.mxu0 0.0
        %1778 = vmatpush.msra.mxu0 0.0
        %1779 = vmatpush.msra.mxu0 0.0
        %1780 = vmatpush.msra.mxu0 0.0
        %1781 = vmatpush.msra.mxu0 0.0
        %1782 = vmatpush.msra.mxu0 0.0
        %1783 = vmatpush.msra.mxu0 0.0
        %1784 = vmatpush.msra.mxu0 0.0
        %1785 = vmatpush.msra.mxu0 0.0
        %1786 = vmatpush.msra.mxu0 0.0
        %1787 = vmatpush.msra.mxu0 0.0
        %1788 = vmatpush.msra.mxu0 %v1767
        %1789 = vmatpush.msra.mxu0 %v1766
        %1790 = vmatpush.msra.mxu0 %v1765
        %1791 = vmatpush.msra.mxu0 %v1764
        %1792 = vmatmul.f32.gmra.mxu0 %v1774
        %v1793 = vpop.f32.mrf.mxu0
        %v1794 = vadd.f32 %v1771, %v1793
        %1795 = vdwg.mxu0
        %v1796 = vadd.f32 %v1541, %v1794
        %s1797 = scalar_lea.vmem %s12, 1
        %v1798 = vld [vmem:[%s1797] sm:$0x1]
        %s1799 = scalar_lea.vmem %s13, 1
        %v1800 = vld [vmem:[%s1799] sm:$0x1]
        %v1801 = vsel %vm1062, %v1796, 0.0
        %1802 = vadd.xlane.f32.xlu0 %v1801
        %v1803 = vpop.xlane.xlu0 %1802
        %v1804 = vmul.f32 %v1803, %v1072
        %v1805 = vsub.f32 %v1796, %v1804
        %v1806 = vmul.f32 %v1805, %v1805
        %v1807 = vsel %vm1062, %v1806, 0.0
        %1808 = vadd.xlane.f32.xlu0 %v1807
        %v1809 = vpop.xlane.xlu0 %1808
        %v1810 = vmul.f32 %v1809, %v1072
        %v1811 = vadd.f32 %v1810, 1e-12
        %v1812 = vrsqrt.pop %v1811
        %v1813 = vmul.f32 %v1812, %v1811
        %v1814 = vmul.f32 %v1813, %v1812
        %v1815 = vmul.f32 0.5, %v1814
        %v1816 = vsub.f32 1.5, %v1815
        %v1817 = vmul.f32 %v1812, %v1816
        %vm1818 = vweird.f32 %v1811
        %vm1819 = vweird.f32 %v1812
        %vm1820 = vmor %vm1818, %vm1819
        %v1821 = vsel %vm1820, %v1812, %v1817
        %v1822 = vmul.f32 %v1805, %v1821
        %v1824 = vperm.slane %v1798, 0
        %v1826 = vmul.f32 %v1822, %v1824
        %v1828 = vperm.slane %v1800, 0
        %v1830 = vadd.f32 %v1826, %v1828
        %s1831 = scalar_lea.vmem [#allocation7], 32
        %v1832 = vld [vmem:[%s1831] sm:$0xff]
        %v1833 = vld [vmem:[%s1831 + $0x8] sm:$0xff]
        %v1834 = vld [vmem:[%s1831 + $0x10] sm:$0xff]
        %v1835 = vld [vmem:[%s1831 + $0x18] sm:$0xff]
        %s1836 = scalar_lea.vmem %s15, 1
        %v1837 = vld [vmem:[%s1836] sm:$0x1]
        %v1839 = vperm.slane %v1837, 0
        %v1842 = vsel %vm1062, %v1830, 0
        %1844 = vmatpush.msra.mxu0 0.0
        %1845 = vmatpush.msra.mxu0 0.0
        %1846 = vmatpush.msra.mxu0 0.0
        %1847 = vmatpush.msra.mxu0 0.0
        %1848 = vmatpush.msra.mxu0 0.0
        %1849 = vmatpush.msra.mxu0 0.0
        %1850 = vmatpush.msra.mxu0 0.0
        %1851 = vmatpush.msra.mxu0 0.0
        %1852 = vmatpush.msra.mxu0 0.0
        %1853 = vmatpush.msra.mxu0 0.0
        %1854 = vmatpush.msra.mxu0 0.0
        %1855 = vmatpush.msra.mxu0 0.0
        %1856 = vmatpush.msra.mxu0 %v1835
        %1857 = vmatpush.msra.mxu0 %v1834
        %1858 = vmatpush.msra.mxu0 %v1833
        %1859 = vmatpush.msra.mxu0 %v1832
        %1860 = vmatmul.f32.gmra.mxu0 %v1842
        %v1861 = vpop.f32.mrf.mxu0
        %v1862 = vadd.f32 %v1839, %v1861
        %1863 = vdwg.mxu0
        %v1864 = vmul.f32 %v1862, 0.5
        %v1865 = vmul.f32 %v1862, 0.044715
        %v1866 = vmul.f32 %v1865, %v1862
        %v1867 = vmul.f32 %v1866, %v1862
        %v1868 = vadd.f32 %v1862, %v1867
        %v1869 = vmul.f32 %v1868, 0.7978846
        %v1870 = vtanh.pop %v1869
        %v1871 = vadd.f32 %v1870, 1.0
        %v1872 = vmul.f32 %v1864, %v1871
        %s1873 = scalar_lea.vmem [#allocation9], 64
        %v1874 = vld [vmem:[%s1873] sm:$0xff]
        %v1875 = vld [vmem:[%s1873 + $0x8] sm:$0xff]
        %v1876 = vld [vmem:[%s1873 + $0x10] sm:$0xff]
        %v1877 = vld [vmem:[%s1873 + $0x18] sm:$0xff]
        %v1878 = vld [vmem:[%s1873 + $0x20] sm:$0xff]
        %v1879 = vld [vmem:[%s1873 + $0x28] sm:$0xff]
        %v1880 = vld [vmem:[%s1873 + $0x30] sm:$0xff]
        %v1881 = vld [vmem:[%s1873 + $0x38] sm:$0xff]
        %s1882 = scalar_lea.vmem %s17, 1
        %v1883 = vld [vmem:[%s1882] sm:$0x1]
        %v1885 = vperm.slane %v1883, 0
        %v1888 = vsel %vm1485, %v1872, 0
        %1890 = vmatpush.msra.mxu0 0.0
        %1891 = vmatpush.msra.mxu0 0.0
        %1892 = vmatpush.msra.mxu0 0.0
        %1893 = vmatpush.msra.mxu0 0.0
        %1894 = vmatpush.msra.mxu0 0.0
        %1895 = vmatpush.msra.mxu0 0.0
        %1896 = vmatpush.msra.mxu0 0.0
        %1897 = vmatpush.msra.mxu0 0.0
        %1898 = vmatpush.msra.mxu0 %v1881
        %1899 = vmatpush.msra.mxu0 %v1880
        %1900 = vmatpush.msra.mxu0 %v1879
        %1901 = vmatpush.msra.mxu0 %v1878
        %1902 = vmatpush.msra.mxu0 %v1877
        %1903 = vmatpush.msra.mxu0 %v1876
        %1904 = vmatpush.msra.mxu0 %v1875
        %1905 = vmatpush.msra.mxu0 %v1874
        %1906 = vmatmul.f32.gmra.mxu0 %v1888
        %v1907 = vpop.f32.mrf.mxu0
        %v1908 = vadd.f32 %v1885, %v1907
        %1909 = vdwg.mxu0
        %v1910 = vadd.f32 %v1830, %v1908
        %s1911 = scalar_lea.vmem %s18, 1
        %v1912 = vld [vmem:[%s1911] sm:$0x1]
        %s1913 = scalar_lea.vmem %s19, 1
        %v1914 = vld [vmem:[%s1913] sm:$0x1]
        %v1915 = vsel %vm1062, %v1910, 0.0
        %1916 = vadd.xlane.f32.xlu0 %v1915
        %v1917 = vpop.xlane.xlu0 %1916
        %v1918 = vmul.f32 %v1917, %v1072
        %v1919 = vsub.f32 %v1910, %v1918
        %v1920 = vmul.f32 %v1919, %v1919
        %v1921 = vsel %vm1062, %v1920, 0.0
        %1922 = vadd.xlane.f32.xlu0 %v1921
        %v1923 = vpop.xlane.xlu0 %1922
        %v1924 = vmul.f32 %v1923, %v1072
        %v1925 = vadd.f32 %v1924, 1e-12
        %v1926 = vrsqrt.pop %v1925
        %v1927 = vmul.f32 %v1926, %v1925
        %v1928 = vmul.f32 %v1927, %v1926
        %v1929 = vmul.f32 0.5, %v1928
        %v1930 = vsub.f32 1.5, %v1929
        %v1931 = vmul.f32 %v1926, %v1930
        %vm1932 = vweird.f32 %v1925
        %vm1933 = vweird.f32 %v1926
        %vm1934 = vmor %vm1932, %vm1933
        %v1935 = vsel %vm1934, %v1926, %v1931
        %v1936 = vmul.f32 %v1919, %v1935
        %v1938 = vperm.slane %v1912, 0
        %v1940 = vmul.f32 %v1936, %v1938
        %v1942 = vperm.slane %v1914, 0
        %v1944 = vadd.f32 %v1940, %v1942
        %v1945 = vld [vmem:[#allocation10] sm:$0xff]
        %v1946 = vld [vmem:[#allocation10 + $0x8] sm:$0xff]
        %v1947 = vld [vmem:[#allocation10 + $0x10] sm:$0xff]
        %v1948 = vld [vmem:[#allocation10 + $0x18] sm:$0xff]
        %v1949 = vld [vmem:[%s21] sm:$0x1]
        %v1951 = vsel %vm1062, %v1944, 0
        %1953 = vmatpush.msra.mxu0 0.0
        %1954 = vmatpush.msra.mxu0 0.0
        %1955 = vmatpush.msra.mxu0 0.0
        %1956 = vmatpush.msra.mxu0 0.0
        %1957 = vmatpush.msra.mxu0 0.0
        %1958 = vmatpush.msra.mxu0 0.0
        %1959 = vmatpush.msra.mxu0 0.0
        %1960 = vmatpush.msra.mxu0 0.0
        %1961 = vmatpush.msra.mxu0 0.0
        %1962 = vmatpush.msra.mxu0 0.0
        %1963 = vmatpush.msra.mxu0 0.0
        %1964 = vmatpush.msra.mxu0 0.0
        %1965 = vmatpush.msra.mxu0 %v1948
        %1966 = vmatpush.msra.mxu0 %v1947
        %1967 = vmatpush.msra.mxu0 %v1946
        %1968 = vmatpush.msra.mxu0 %v1945
        %1969 = vmatmul.f32.gmra.mxu0 %v1951
        %v1970 = vpop.f32.mrf.mxu0
        %v1971 = vadd.f32 %v1949, %v1970
        %1972 = vdwg.mxu0
        %v1973 = vtanh.pop %v1971
        %v1974 = vld [vmem:[%s22] sm:$0xff]
        %v1975 = vld [vmem:[%s22 + $0x8] sm:$0xff]
        %v1976 = vld [vmem:[%s22 + $0x10] sm:$0xff]
        %v1977 = vld [vmem:[%s22 + $0x18] sm:$0xff]
        %v1978 = vld [vmem:[%s23] sm:$0x1]
        %v1980 = vperm.slane %v1978, 0
        %1982 = vmatpush.msra.mxu0 0.0
        %1983 = vmatpush.msra.mxu0 0.0
        %1984 = vmatpush.msra.mxu0 0.0
        %1985 = vmatpush.msra.mxu0 0.0
        %1986 = vmatpush.msra.mxu0 0.0
        %1987 = vmatpush.msra.mxu0 0.0
        %1988 = vmatpush.msra.mxu0 0.0
        %1989 = vmatpush.msra.mxu0 0.0
        %1990 = vmatpush.msra.mxu0 0.0
        %1991 = vmatpush.msra.mxu0 0.0
        %1992 = vmatpush.msra.mxu0 0.0
        %1993 = vmatpush.msra.mxu0 0.0
        %1994 = vmatpush.msra.mxu0 %v1977
        %1995 = vmatpush.msra.mxu0 %v1976
        %1996 = vmatpush.msra.mxu0 %v1975
        %1997 = vmatpush.msra.mxu0 %v1974
        %1998 = vmatmul.f32.gmra.mxu0 %v1951
        %v1999 = vpop.f32.mrf.mxu0
        %v2000 = vadd.f32 %v1980, %v1999
        %2001 = vdwg.mxu0
        %v2003 = vsel %vm1062, %v1973, 0
        %2005 = vmatpush.msra.mxu0 0.0
        %2006 = vmatpush.msra.mxu0 0.0
        %2007 = vmatpush.msra.mxu0 0.0
        %2008 = vmatpush.msra.mxu0 0.0
        %2009 = vmatpush.msra.mxu0 0.0
        %2010 = vmatpush.msra.mxu0 0.0
        %2011 = vmatpush.msra.mxu0 0.0
        %2012 = vmatpush.msra.mxu0 0.0
        %2013 = vmatpush.msra.mxu0 0.0
        %2014 = vmatpush.msra.mxu0 0.0
        %2015 = vmatpush.msra.mxu0 0.0
        %2016 = vmatpush.msra.mxu0 0.0
        %2017 = vmatpush.msra.mxu0 %v1977
        %2018 = vmatpush.msra.mxu0 %v1976
        %2019 = vmatpush.msra.mxu0 %v1975
        %2020 = vmatpush.msra.mxu0 %v1974
        %2021 = vmatmul.f32.gmra.mxu0 %v2003
        %v2022 = vpop.f32.mrf.mxu0
        %v2023 = vadd.f32 %v1978, %v2022
        %2024 = vdwg.mxu0
        %2025 = vst [vmem:[%s995] sm:$0xff] %v2000
        %2026 = vst [vmem:[%s995 + $0x8] sm:$0x1] %v2023
        %p2027 = scmp.lt.s32.totalorder %s43, 1
        %s2028 = scalar_select %p2027, %s43, 1
        %s2029 = smul.addr %s2028, 2
        %s2030 = smul.addr %s2029, 8
        %s2031 = scalar_lea.vmem %s27, %s2030
        // Predicated region
        $region165: #{bert_multitask_forward.1} parent=127 // pred_check
          %p2032 = pneg %p643
        $region166: #{bert_multitask_forward.1} parent=127 // pred_check_branch
          %2034 = sbr.rel (%p2032) target = $region168
        $region167: #{bert_multitask_forward.1} parent=127 // pred_region
          _
        $region168: #{bert_multitask_forward.1} parent=127 // pred_fallthru
          _
      $region128: #{bert_multitask_forward.1} parent=5 // pred_fallthru
        _
      %p2035 = scmp.le.s32.totalorder 2, %s38
      // Predicated region
      $region169: #{bert_multitask_forward.1} parent=5 // pred_check
        %p2036 = pneg %p2035
      $region170: #{bert_multitask_forward.1} parent=5 // pred_check_branch
        %2038 = sbr.rel (%p2036) target = $region172
      $region171: #{bert_multitask_forward.1} parent=5 // pred_region
        %s2039 = ssub.s32 %s38, 2
        // Predicated region
        $region173: #{bert_multitask_forward.1} parent=171 // pred_check
          %p2040 = pneg %p649
        $region174: #{bert_multitask_forward.1} parent=171 // pred_check_branch
          %2042 = sbr.rel (%p2040) target = $region176
        $region175: #{bert_multitask_forward.1} parent=171 // pred_region
          %p2043 = scmp.lt.s32.totalorder %s44, 1
          %s2044 = scalar_select %p2043, %s44, 1
          %s2045 = smul.addr %s2044, 2
          %s2046 = smul.addr %s2045, 8
          %s2047 = scalar_lea.vmem %s27, %s2046
        $region176: #{bert_multitask_forward.1} parent=171 // pred_fallthru
          _
      $region172: #{bert_multitask_forward.1} parent=5 // pred_fallthru
        _
    $region6: #{bert_multitask_forward.1} parent=1 // loop_footer
      %s42 = sadd.s32 1, %s38
    $region7: #{bert_multitask_forward.1} parent=1 // loop_footer_branch
      %37 = sbr.rel target = $region3
    $region8: #{bert_multitask_forward.1} parent=1 // loop_exit
      _
    %2048 = vsyncpa [#allocation3], 1
    %s2049 = scalar_lea.sflag [#allocation3], 1
    %2050 = vsyncpa %s2049, 1
    %2051 = vsyncpa [#allocation5], 1
    %2052 = vsyncpa [#allocation8], 1
    %2053 = vsyncpa [#allocation11], 1
    %2054 = vsyncpa [#allocation14], 1

</llo_original>
